<compile_context>
chip_gen: v6e
topology: v6e:2x2x1
jax: 0.10.0
libtpu: 0.0.40
codegen_flags: <defaults>
</compile_context>

<pallas_src>
import math
from functools import partial

import jax
import jax.numpy as jnp
from jax import lax
from jax.experimental import pallas as pl
from jax.experimental.pallas import tpu as pltpu


def _round_up(x, m):
    return (x + m - 1) // m * m


def _pick_o_tile(o_padded, max_tile=512, quantum=128):
    """Largest multiple of `quantum` that divides o_padded and is <= max_tile."""
    units = o_padded // quantum
    best = 1
    for d in range(1, units + 1):
        if units % d == 0 and d * quantum <= max_tile:
            best = d
    return best * quantum


def _pick_row_tile(b, cap=256):
    """Row-block size: minimal padding; >= 2 row blocks when the batch is big
    enough so both TensorCores get work on the 'parallel' axis."""
    if b >= 64:
        tm = _round_up(-(-b // 2), 8)
    else:
        tm = _round_up(b, 8)
    return min(tm, cap)


# --------------------------------------------------------------------------- #
# Fused kernel: score tile -> resident [tm, Op] slab, running row max,
# in-VMEM softmax finalize on the last O tile.
# --------------------------------------------------------------------------- #
def _generate_mode_kernel(o_real, x_ref, w_ref, b_ref, out_ref, m_sc):
    j = pl.program_id(1)
    nj = pl.num_programs(1)
    tn = w_ref.shape[-1]
    o_pad = out_ref.shape[-1]

    # [tm, Kp] @ [Kp, tn] -> [tm, tn]: single lane-dense MXU contraction.
    s = jnp.dot(x_ref[...], w_ref[...], preferred_element_type=jnp.float32)
    s = s + b_ref[...]

    m_cur = jnp.max(s, axis=-1, keepdims=True)

    @pl.when(j == 0)
    def _():
        m_sc[...] = m_cur

    @pl.when(j > 0)
    def _():
        m_sc[...] = jnp.maximum(m_sc[...], m_cur)

    # Stash raw scores into the VMEM-resident output slab (128-aligned offset).
    start = pl.multiple_of(j * tn, tn)
    out_ref[:, pl.ds(start, tn)] = s.astype(out_ref.dtype)

    # Last O tile: finalize softmax over the whole row slab in VMEM.
    # One exp per element; padded entity columns (raw score 0) are excluded
    # from the denominator via an iota mask -- no huge-negative exp arguments.
    @pl.when(j == nj - 1)
    def _():
        scores = out_ref[...].astype(jnp.float32)
        p = jnp.exp(scores - m_sc[...])
        if o_real != o_pad:
            cols = lax.broadcasted_iota(jnp.int32, (1, o_pad), 1)
            p = jnp.where(cols < o_real, p, 0.0)
        denom = jnp.sum(p, axis=-1, keepdims=True)
        out_ref[...] = (p * pl.reciprocal(denom, approx=False)).astype(out_ref.dtype)


# --------------------------------------------------------------------------- #
# One-time parameter preprocessing (outside the hot path): transpose to
# [3H, O], zero-pad K -> multiple of 128 and O -> multiple of 128, cast.
# --------------------------------------------------------------------------- #
def prepare_generate_mode_params(weight, bias, *, compute_dtype=jnp.float32,
                                 lane=128):
    O, K = weight.shape
    Kp = _round_up(K, lane)
    Op = _round_up(O, lane)
    w_t = jnp.zeros((Kp, Op), dtype=compute_dtype)
    w_t = w_t.at[:K, :O].set(weight.T.astype(compute_dtype))
    b = jnp.zeros((1, Op), dtype=jnp.float32)
    b = b.at[:, :O].set(bias.reshape(1, O).astype(jnp.float32))
    return w_t, b


@partial(jax.jit, static_argnames=("entity", "output_dim", "tn_max"))
def generate_mode_forward(ent_embed, rel_embed, tim_embed, w_prepped,
                          bias_prepped, *, entity, output_dim, tn_max=512):
    """JAX/Pallas port of Generate_mode.forward.

    ent_embed, rel_embed, tim_embed : [B, H] float32
    w_prepped, bias_prepped         : output of prepare_generate_mode_params
    """
    if entity == "object":
        first, second = ent_embed, rel_embed
    elif entity == "subject":
        first, second = rel_embed, ent_embed
    else:
        raise ValueError("entity must be 'object' or 'subject'")

    B, H = first.shape
    Kp, Op = w_prepped.shape
    O = int(output_dim)
    assert 3 * H <= Kp and O <= Op, "weight was not prepared for these shapes"

    compute_dtype = w_prepped.dtype
    out_dtype = ent_embed.dtype

    tm = _pick_row_tile(B)
    Bp = _round_up(B, tm)
    tn = _pick_o_tile(Op, tn_max)
    grid_b, grid_o = Bp // tm, Op // tn

    # m_t = [first | second | tim], zero-padded to the MXU-friendly Kp lanes.
    x = jnp.concatenate((first, second, tim_embed), axis=1).astype(compute_dtype)
    x = jnp.pad(x, ((0, Bp - B), (0, Kp - 3 * H)))

    itemsize = jnp.dtype(compute_dtype).itemsize
    out_itemsize = jnp.dtype(out_dtype).itemsize

    # VMEM high-water estimate: resident output slab (x2 for the row axis),
    # double-buffered weight / x tiles, bias, stats scratch.
    vmem_est = (2 * tm * Op * out_itemsize + 2 * Kp * tn * itemsize
                + 2 * tm * Kp * itemsize + 2 * tn * 4 + tm * 4)
    cp = dict(dimension_semantics=("parallel", "arbitrary"))
    if vmem_est > (32 << 20):
        cp["vmem_limit_bytes"] = min(vmem_est + (8 << 20), 100 << 20)

    out = pl.pallas_call(
        partial(_generate_mode_kernel, O),
        out_shape=jax.ShapeDtypeStruct((Bp, Op), out_dtype),
        grid_spec=pltpu.PrefetchScalarGridSpec(
            num_scalar_prefetch=0,
            grid=(grid_b, grid_o),
            in_specs=[
                pl.BlockSpec((tm, Kp), lambda i, j: (i, 0)),   # m_t rows (resident over j)
                pl.BlockSpec((Kp, tn), lambda i, j: (0, j)),   # weight slab, lane-dense
                pl.BlockSpec((1, tn), lambda i, j: (0, j)),    # bias
            ],
            out_specs=pl.BlockSpec((tm, Op), lambda i, j: (i, 0)),  # resident row slab
            scratch_shapes=[pltpu.VMEM((tm, 1), jnp.float32)],      # running row max
        ),
        compiler_params=pltpu.CompilerParams(**cp),
        cost_estimate=pl.CostEstimate(
            flops=2 * Bp * Kp * Op + 3 * Bp * Op,
            transcendentals=Bp * Op,
            bytes_accessed=(Bp * Kp * itemsize + grid_b * Kp * Op * itemsize
                            + Op * 4 + Bp * Op * out_itemsize),
        ),
    )(x, w_prepped, bias_prepped)

    if Bp != B or Op != O:
        out = out[:B, :O]
    return out


def _reference(ent, rel, tim, weight, bias, entity):
    if entity == "object":
        m_t = jnp.concatenate((ent, rel, tim), axis=1)
    else:
        m_t = jnp.concatenate((rel, ent, tim), axis=1)
    # HIGHEST so the f32 reference matmul is not silently run at bf16 precision.
    score = jnp.dot(m_t, weight.T, precision=lax.Precision.HIGHEST) + bias
    return jax.nn.softmax(score, axis=1)


if __name__ == "__main__":
    # hidden_size = 32 -> in_features = 96, output_dim = #entities = 700,
    # batch of 200 queries.  Exercises: K padding (96 -> 128), O padding
    # (700 -> 768) + denominator masking, two O tiles (tn = 384, online max),
    # two row blocks (tm = 104) and row-padding crop.
    B, H, O = 200, 32, 700

    key = jax.random.PRNGKey(0)
    k_ent, k_rel, k_tim, k_w, k_b = jax.random.split(key, 5)

    ent_embed = jax.random.normal(k_ent, (B, H), dtype=jnp.float32)
    rel_embed = jax.random.normal(k_rel, (B, H), dtype=jnp.float32)
    tim_embed = jax.random.normal(k_tim, (B, H), dtype=jnp.float32)

    # Deterministic nn.Linear-style init: U(-1/sqrt(fan_in), 1/sqrt(fan_in))
    fan_in = 3 * H
    bound = 1.0 / math.sqrt(fan_in)
    weight = jax.random.uniform(k_w, (O, fan_in), minval=-bound, maxval=bound,
                                dtype=jnp.float32)
    bias = jax.random.uniform(k_b, (O,), minval=-bound, maxval=bound,
                              dtype=jnp.float32)

    # One-time weight/bias preprocessing (transpose + pad), outside the hot path.
    w_prepped, bias_prepped = prepare_generate_mode_params(weight, bias)

    for entity in ("object", "subject"):
        out = generate_mode_forward(ent_embed, rel_embed, tim_embed,
                                    w_prepped, bias_prepped,
                                    entity=entity, output_dim=O)
        out = jax.block_until_ready(out)
        ref = _reference(ent_embed, rel_embed, tim_embed, weight, bias, entity)

        assert out.shape == (B, O)
        assert bool(jnp.all(jnp.isfinite(out))), f"non-finite output ({entity})"
        max_err = float(jnp.max(jnp.abs(out - ref)))
        assert jnp.allclose(out, ref, atol=1e-4, rtol=2e-3), \
            f"mismatch vs reference ({entity}): max abs err {max_err:.3e}"
        # rows of a softmax sum to 1 (exact reciprocal is used)
        assert jnp.allclose(jnp.sum(out, axis=1), jnp.ones((B,)), atol=1e-4)

    print("KERNEL_OK")
</pallas_src>

<mosaic_0001>
module attributes {stable_mosaic.version = 11 : i64} {
  func.func @_generate_mode_kernel(%arg0: i32, %arg1: i32, %arg2: memref<104x128xf32, #tpu.memory_space<vmem>>, %arg3: memref<128x384xf32, #tpu.memory_space<vmem>>, %arg4: memref<1x384xf32, #tpu.memory_space<vmem>>, %arg5: memref<104x768xf32, #tpu.memory_space<vmem>>, %arg6: memref<104x1xf32, #tpu.memory_space<vmem>>) attributes {dimension_semantics = [#tpu.dimension_semantics<parallel>, #tpu.dimension_semantics<arbitrary>], iteration_bounds = array<i64: 2, 2>, scalar_prefetch = 0 : i64, scratch_operands = 1 : i64, tpu.core_type = #tpu.core_type<tc>, window_params = [{transform_indices = @transform_0, window_bounds = array<i64: 104, 128>}, {transform_indices = @transform_1, window_bounds = array<i64: 128, 384>}, {transform_indices = @transform_2, window_bounds = array<i64: 1, 384>}, {transform_indices = @transform_3, window_bounds = array<i64: 104, 768>}]} {
    %c0 = arith.constant 0 : index
    %c0_0 = arith.constant 0 : index
    %0 = vector.load %arg2[%c0, %c0_0] : memref<104x128xf32, #tpu.memory_space<vmem>>, vector<104x128xf32>
    %c0_1 = arith.constant 0 : index
    %c0_2 = arith.constant 0 : index
    %1 = vector.load %arg3[%c0_1, %c0_2] : memref<128x384xf32, #tpu.memory_space<vmem>>, vector<128x384xf32>
    %cst = arith.constant dense<0.000000e+00> : vector<104x384xf32>
    %2 = tpu.matmul %0, %1, %cst {dimension_numbers = #tpu.dot_dimension_numbers<[1], [0], [0], [1], [0, 0, 1, 1], [], []>} : vector<104x128xf32>, vector<128x384xf32>, vector<104x384xf32> -> vector<104x384xf32>
    %c0_3 = arith.constant 0 : index
    %c0_4 = arith.constant 0 : index
    %3 = vector.load %arg4[%c0_3, %c0_4] : memref<1x384xf32, #tpu.memory_space<vmem>>, vector<1x384xf32>
    %4 = vector.broadcast %3 : vector<1x384xf32> to vector<104x384xf32>
    %5 = arith.addf %2, %4 : vector<104x384xf32>
    %cst_5 = arith.constant dense<0xFF800000> : vector<104xf32>
    %6 = vector.multi_reduction <maximumf>, %5, %cst_5 [1] : vector<104x384xf32> to vector<104xf32>
    %7 = vector.shape_cast %6 : vector<104xf32> to vector<104x1xf32>
    %c0_i32 = arith.constant 0 : i32
    %8 = arith.cmpi eq, %arg1, %c0_i32 : i32
    %9 = arith.extui %8 : i1 to i32
    %c0_i32_6 = arith.constant 0 : i32
    %10 = arith.cmpi ne, %9, %c0_i32_6 : i32
    scf.if %10 {
      %c0_11 = arith.constant 0 : index
      %c0_12 = arith.constant 0 : index
      %21 = vector.load %arg6[%c0_11, %c0_12] : memref<104x1xf32, #tpu.memory_space<vmem>>, vector<104x1xf32>
      tpu.vector_store %arg6[%c0_11, %c0_12], %7 {strides = array<i32>} : memref<104x1xf32, #tpu.memory_space<vmem>>, vector<104x1xf32>,
    } else {
    }
    %c0_i32_7 = arith.constant 0 : i32
    %11 = arith.cmpi sgt, %arg1, %c0_i32_7 : i32
    %12 = arith.extui %11 : i1 to i32
    %c0_i32_8 = arith.constant 0 : i32
    %13 = arith.cmpi ne, %12, %c0_i32_8 : i32
    scf.if %13 {
      %c0_11 = arith.constant 0 : index
      %c0_12 = arith.constant 0 : index
      %21 = vector.load %arg6[%c0_11, %c0_12] : memref<104x1xf32, #tpu.memory_space<vmem>>, vector<104x1xf32>
      %22 = arith.maximumf %21, %7 : vector<104x1xf32>
      %c0_13 = arith.constant 0 : index
      %c0_14 = arith.constant 0 : index
      %23 = vector.load %arg6[%c0_13, %c0_14] : memref<104x1xf32, #tpu.memory_space<vmem>>, vector<104x1xf32>
      tpu.vector_store %arg6[%c0_13, %c0_14], %22 {strides = array<i32>} : memref<104x1xf32, #tpu.memory_space<vmem>>, vector<104x1xf32>,
    } else {
    }
    %c384_i32 = arith.constant 384 : i32
    %14 = arith.muli %arg1, %c384_i32 : i32
    %15 = tpu.assume_multiple %14, 384 : i32
    %c0_9 = arith.constant 0 : index
    %16 = arith.index_cast %15 : i32 to index
    %17 = vector.load %arg5[%c0_9, %16] : memref<104x768xf32, #tpu.memory_space<vmem>>, vector<104x384xf32>
    tpu.vector_store %arg5[%c0_9, %16], %5 {strides = array<i32>} : memref<104x768xf32, #tpu.memory_space<vmem>>, vector<104x384xf32>,
    %c1_i32 = arith.constant 1 : i32
    %18 = arith.cmpi eq, %arg1, %c1_i32 : i32
    %19 = arith.extui %18 : i1 to i32
    %c0_i32_10 = arith.constant 0 : i32
    %20 = arith.cmpi ne, %19, %c0_i32_10 : i32
    scf.if %20 {
      %c0_11 = arith.constant 0 : index
      %c0_12 = arith.constant 0 : index
      %21 = vector.load %arg5[%c0_11, %c0_12] : memref<104x768xf32, #tpu.memory_space<vmem>>, vector<104x768xf32>
      %c0_13 = arith.constant 0 : index
      %c0_14 = arith.constant 0 : index
      %22 = vector.load %arg6[%c0_13, %c0_14] : memref<104x1xf32, #tpu.memory_space<vmem>>, vector<104x1xf32>
      %23 = vector.broadcast %22 : vector<104x1xf32> to vector<104x768xf32>
      %24 = arith.subf %21, %23 : vector<104x768xf32>
      %25 = math.exp %24 : vector<104x768xf32>
      %26 = tpu.iota {dimensions = array<i32: 1>} : vector<1x768xi32>
      %c700_i32 = arith.constant 700 : i32
      %27 = vector.broadcast %c700_i32 : i32 to vector<1x768xi32>
      %28 = arith.cmpi slt, %26, %27 : vector<1x768xi32>
      %cst_15 = arith.constant 0.000000e+00 : f32
      %29 = vector.shape_cast %28 : vector<1x768xi1> to vector<1x768xi1>
      %30 = vector.broadcast %29 : vector<1x768xi1> to vector<104x768xi1>
      %31 = vector.broadcast %cst_15 : f32 to vector<104x768xf32>
      %32 = arith.select %30, %25, %31 : vector<104x768xi1>, vector<104x768xf32>
      %cst_16 = arith.constant dense<0.000000e+00> : vector<104xf32>
      %33 = vector.multi_reduction <add>, %32, %cst_16 [1] : vector<104x768xf32> to vector<104xf32>
      %34 = vector.shape_cast %33 : vector<104xf32> to vector<104x1xf32>
      %35 = tpu.reciprocal %34 : vector<104x1xf32> -> vector<104x1xf32>
      %36 = vector.broadcast %35 : vector<104x1xf32> to vector<104x768xf32>
      %37 = arith.mulf %32, %36 : vector<104x768xf32>
      %c0_17 = arith.constant 0 : index
      %c0_18 = arith.constant 0 : index
      %38 = vector.load %arg5[%c0_17, %c0_18] : memref<104x768xf32, #tpu.memory_space<vmem>>, vector<104x768xf32>
      tpu.vector_store %arg5[%c0_17, %c0_18], %37 {strides = array<i32>} : memref<104x768xf32, #tpu.memory_space<vmem>>, vector<104x768xf32>,
    } else {
    }
    return
  }
  func.func @transform_0(%arg0: i32, %arg1: i32) -> (i32, i32) {
    %c0_i32 = arith.constant 0 : i32
    %c0_i32_0 = arith.constant 0 : i32
    return %arg0, %c0_i32 : i32, i32
  }
  func.func @transform_1(%arg0: i32, %arg1: i32) -> (i32, i32) {
    %c0_i32 = arith.constant 0 : i32
    %c0_i32_0 = arith.constant 0 : i32
    return %c0_i32, %arg1 : i32, i32
  }
  func.func @transform_2(%arg0: i32, %arg1: i32) -> (i32, i32) {
    %c0_i32 = arith.constant 0 : i32
    %c0_i32_0 = arith.constant 0 : i32
    return %c0_i32, %arg1 : i32, i32
  }
  func.func @transform_3(%arg0: i32, %arg1: i32) -> (i32, i32) {
    %c0_i32 = arith.constant 0 : i32
    %c0_i32_0 = arith.constant 0 : i32
    return %arg0, %c0_i32 : i32, i32
  }
}

</mosaic_0001>

<llo_original>
// kernel: generate_mode_forward.1
$region0: #{generate_mode_forward.1}
  #allocation0 [shape = 'u32[]', space=smem, size = 0x4, offset = 0x4, fixed_abs, tag = 'smem constant byte address 0x4 - core index']
  #allocation1 [shape = 'u32[144,128]{1,0:T(1,128)}', space=vmem, size = 0x12000, scoped, tag = 'internal scratch']
  #allocation2 [shape = 'f32[104,1]{1,0:T(8,128)}', space=vmem, size = 0xd000, scoped, tag = 'scratch operand']
  %s0 = inlined_call_operand.vmem [shape: f32[208,128], index: 0, kind: input, shape index: {}]
  %s1 = inlined_call_operand.vmem [shape: f32[128,768], index: 1, kind: input, shape index: {}]
  %s2 = inlined_call_operand.vmem [shape: f32[1,768], index: 2, kind: input, shape index: {}]
  %s3 = inlined_call_operand.vmem [shape: f32[208,768], index: 3, kind: output, shape index: {}]
  %s4 = sld [smem:[#allocation0]]
  $region80: #{generate_mode_forward.1} parent=0
    _
  %s6 = ssub.s32 1, %s4
  %s7 = scalar_select 0, %s6, %s4
  $region1: #{generate_mode_forward.1} parent=0
    #allocation3 [shape = 'u8[393216]{0}', space=vmem, size = 0x60000, scoped, tag = 'input window, operand 1']
    loop: start=0, step=1, limit=6
    $region2: #{generate_mode_forward.1} parent=1 // loop_pre_header
      _
    $region3: #{generate_mode_forward.1} parent=1 // loop_header
      %s9 = sphi 0, %s13
      %p10 = scmp.ge.s32.totalorder %s9, 6
      %s16 = sphi 0, %s28
      %s17 = sphi 0, %s24
      %s18 = sphi 0, %s16
      %s19 = sphi 0, %s17
      %s20 = sphi 0, %s18
      %s21 = sphi 0, %s19
      %s31 = sphi 0, %s33
      %s34 = sphi 0, %s31
      %s35 = sphi 0, %s34
      %s51 = sphi 0, %s35
      %s57 = sphi 0, %s59
      %s60 = sphi 0, %s57
      %s61 = sphi 0, %s60
      %s77 = sphi 0, %s61
      %s83 = sphi 0, %s85
      %s86 = sphi 0, %s83
      %s87 = sphi 0, %s86
      %s103 = sphi 0, %s87
      %s109 = sphi 0, %s111
      %s112 = sphi 0, %s109
      %s113 = sphi 0, %s112
      %s129 = sphi 0, %s113
    $region4: #{generate_mode_forward.1} parent=1 // loop_header_branch
      %12 = sbr.rel (%p10) target = $region8
    $region5: #{generate_mode_forward.1} parent=1 // loop_body
      %s14 = ssub.s32 %s9, 1
      %s15 = ssub.s32 %s9, 2
      %s22 = sadd.s32 1, %s17
      %p23 = scmp.ge.s32.totalorder %s22, 2
      %s24 = scalar_select %p23, 0, %s22
      %s25 = sadd.s32 1, %s16
      %s26 = scalar_select %p23, %s25, %s16
      %p27 = scmp.ge.s32.totalorder %s26, 2
      %s28 = scalar_select %p27, 0, %s26
      %s29 = ssub.s32 %s16, %s28
      %p30 = scmp.eq.s32.totalorder %s29, 0
      %s32 = sadd.s32 %s31, 1
      %s33 = scalar_select %p30, %s31, %s32
      %p36 = pneg %p30
      %p37 = scmp.eq.s32.totalorder %s9, 3
      %p38 = por %p36, %p37
      %p39 = scmp.ne.s32.totalorder %s31, %s34
      %p40 = scmp.eq.s32.totalorder %s9, 0
      %p41 = por %p39, %p40
      %p42 = scmp.ne.s32.totalorder %s31, %s34
      %p43 = scmp.eq.s32.totalorder %s14, 3
      %p44 = por %p42, %p43
      %p45 = scmp.ne.s32.totalorder %s34, %s35
      %p46 = scmp.eq.s32.totalorder %s14, 0
      %p47 = por %p45, %p46
      %p48 = scmp.ne.s32.totalorder %s34, %s35
      %p49 = scmp.eq.s32.totalorder %s15, 3
      %p50 = por %p48, %p49
      %p52 = scmp.ne.s32.totalorder %s35, %s51
      %p53 = scmp.eq.s32.totalorder %s15, 0
      %p54 = por %p52, %p53
      %s55 = ssub.s32 %s17, %s24
      %p56 = scmp.eq.s32.totalorder %s55, 0
      %s58 = sadd.s32 %s57, 1
      %s59 = scalar_select %p56, %s57, %s58
      %p62 = pneg %p56
      %p63 = scmp.eq.s32.totalorder %s9, 3
      %p64 = por %p62, %p63
      %p65 = scmp.ne.s32.totalorder %s57, %s60
      %p66 = scmp.eq.s32.totalorder %s9, 0
      %p67 = por %p65, %p66
      %p68 = scmp.ne.s32.totalorder %s57, %s60
      %p69 = scmp.eq.s32.totalorder %s14, 3
      %p70 = por %p68, %p69
      %p71 = scmp.ne.s32.totalorder %s60, %s61
      %p72 = scmp.eq.s32.totalorder %s14, 0
      %p73 = por %p71, %p72
      %p74 = scmp.ne.s32.totalorder %s60, %s61
      %p75 = scmp.eq.s32.totalorder %s15, 3
      %p76 = por %p74, %p75
      %p78 = scmp.ne.s32.totalorder %s61, %s77
      %p79 = scmp.eq.s32.totalorder %s15, 0
      %p80 = por %p78, %p79
      %s81 = ssub.s32 %s17, %s24
      %p82 = scmp.eq.s32.totalorder %s81, 0
      %s84 = sadd.s32 %s83, 1
      %s85 = scalar_select %p82, %s83, %s84
      %p88 = pneg %p82
      %p89 = scmp.eq.s32.totalorder %s9, 3
      %p90 = por %p88, %p89
      %p91 = scmp.ne.s32.totalorder %s83, %s86
      %p92 = scmp.eq.s32.totalorder %s9, 0
      %p93 = por %p91, %p92
      %p94 = scmp.ne.s32.totalorder %s83, %s86
      %p95 = scmp.eq.s32.totalorder %s14, 3
      %p96 = por %p94, %p95
      %p97 = scmp.ne.s32.totalorder %s86, %s87
      %p98 = scmp.eq.s32.totalorder %s14, 0
      %p99 = por %p97, %p98
      %p100 = scmp.ne.s32.totalorder %s86, %s87
      %p101 = scmp.eq.s32.totalorder %s15, 3
      %p102 = por %p100, %p101
      %p104 = scmp.ne.s32.totalorder %s87, %s103
      %p105 = scmp.eq.s32.totalorder %s15, 0
      %p106 = por %p104, %p105
      %s107 = ssub.s32 %s16, %s28
      %p108 = scmp.eq.s32.totalorder %s107, 0
      %s110 = sadd.s32 %s109, 1
      %s111 = scalar_select %p108, %s109, %s110
      %p114 = pneg %p108
      %p115 = scmp.eq.s32.totalorder %s9, 3
      %p116 = por %p114, %p115
      %p117 = scmp.ne.s32.totalorder %s109, %s112
      %p118 = scmp.eq.s32.totalorder %s9, 0
      %p119 = por %p117, %p118
      %p120 = scmp.ne.s32.totalorder %s109, %s112
      %p121 = scmp.eq.s32.totalorder %s14, 3
      %p122 = por %p120, %p121
      %p123 = scmp.ne.s32.totalorder %s112, %s113
      %p124 = scmp.eq.s32.totalorder %s14, 0
      %p125 = por %p123, %p124
      %p126 = scmp.ne.s32.totalorder %s112, %s113
      %p127 = scmp.eq.s32.totalorder %s15, 3
      %p128 = por %p126, %p127
      %p130 = scmp.ne.s32.totalorder %s113, %s129
      %p131 = scmp.eq.s32.totalorder %s15, 0
      %p132 = por %p130, %p131
      %p133 = scmp.le.s32.totalorder 1, %s9
      %p134 = scmp.lt.s32.totalorder %s9, 5
      %p135 = pnand %p133, %p134
      %p136 = pneg %p135
      // Predicated region
      $region9: #{generate_mode_forward.1} parent=5 // pred_check
        _
      $region10: #{generate_mode_forward.1} parent=5 // pred_check_branch
        %138 = sbr.rel (%p135) target = $region12
      $region11: #{generate_mode_forward.1} parent=5 // pred_region
        %s139 = ssub.s32 %s9, 1
      $region12: #{generate_mode_forward.1} parent=5 // pred_fallthru
        _
      %p140 = scmp.lt.s32.totalorder %s9, 4
      // Predicated region
      $region13: #{generate_mode_forward.1} parent=5 // pred_check
        %p141 = pneg %p140
      $region14: #{generate_mode_forward.1} parent=5 // pred_check_branch
        %143 = sbr.rel (%p141) target = $region16
      $region15: #{generate_mode_forward.1} parent=5 // pred_region
        // Predicated region
        $region17: #{generate_mode_forward.1} parent=15 // pred_check
          %p144 = pneg %p41
        $region18: #{generate_mode_forward.1} parent=15 // pred_check_branch
          %146 = sbr.rel (%p144) target = $region20
        $region19: #{generate_mode_forward.1} parent=15 // pred_region
          %s147 = smul.u32 13, %s16
          %p148 = scmp.lt.s32.totalorder %s147, 25
          %s149 = scalar_select %p148, %s147, 25
          %s150 = smul.addr %s149, 8
          %s151 = scalar_lea.vmem %s0, %s150
          %s152 = smul.u32 13, %s16
        $region20: #{generate_mode_forward.1} parent=15 // pred_fallthru
          _
        // Predicated region
        $region21: #{generate_mode_forward.1} parent=15 // pred_check
          %p153 = pneg %p67
        $region22: #{generate_mode_forward.1} parent=15 // pred_check_branch
          %155 = sbr.rel (%p153) target = $region24
        $region23: #{generate_mode_forward.1} parent=15 // pred_region
          %s156 = sand.u32 %s57, 1
          %s157 = sand.u32 %s57, 1
          %s158 = smul.addr %s157, 384
          %s159 = scalar_lea.vmem [#allocation3], %s158
          %s160 = smul.u32 3, %s17
          %s161 = smul.addr %s160, 8
          %s162 = scalar_lea.vmem %s1, %s161
          // Predicated region
          $region25: #{generate_mode_forward.1} parent=23 // pred_check
            _
          $region26: #{generate_mode_forward.1} parent=23 // pred_check_branch
            %164 = sbr.rel (0) target = $region28
          $region27: #{generate_mode_forward.1} parent=23 // pred_region
            // Predicated region
            $region29: #{generate_mode_forward.1} parent=27 // pred_check
              _
            $region30: #{generate_mode_forward.1} parent=27 // pred_check_branch
              %166 = sbr.rel (0) target = $region32
            $region31: #{generate_mode_forward.1} parent=27 // pred_region
              loop: start=0, step=1, limit=1
              $region33: #{generate_mode_forward.1} parent=31 // loop_pre_header
                _
              $region34: #{generate_mode_forward.1} parent=31 // loop_header
                %s168 = sphi 0, %s172
                %p169 = scmp.ge.s32.totalorder %s168, 1
                %s173 = sphi %s162, %s162
                %s174 = sphi %s159, %s159
              $region35: #{generate_mode_forward.1} parent=31 // loop_header_branch
                %171 = sbr.rel (%p169) target = $region39
              $region36: #{generate_mode_forward.1} parent=31 // loop_body
                %v175 = vld [vmem:[%s173] sm:$0xff]
                %176 = vst [vmem:[%s174] sm:$0xff] %v175
                %v177 = vld [vmem:[%s173 + $0x8] sm:$0xff]
                %178 = vst [vmem:[%s174 + $0x8] sm:$0xff] %v177
                %v179 = vld [vmem:[%s173 + $0x10] sm:$0xff]
                %180 = vst [vmem:[%s174 + $0x10] sm:$0xff] %v179
                %v181 = vld [vmem:[%s173 + $0x30] sm:$0xff]
                %182 = vst [vmem:[%s174 + $0x18] sm:$0xff] %v181
                %v183 = vld [vmem:[%s173 + $0x38] sm:$0xff]
                %184 = vst [vmem:[%s174 + $0x20] sm:$0xff] %v183
                %v185 = vld [vmem:[%s173 + $0x40] sm:$0xff]
                %186 = vst [vmem:[%s174 + $0x28] sm:$0xff] %v185
                %v187 = vld [vmem:[%s173 + $0x60] sm:$0xff]
                %188 = vst [vmem:[%s174 + $0x30] sm:$0xff] %v187
                %v189 = vld [vmem:[%s173 + $0x68] sm:$0xff]
                %190 = vst [vmem:[%s174 + $0x38] sm:$0xff] %v189
                %v191 = vld [vmem:[%s173 + $0x70] sm:$0xff]
                %192 = vst [vmem:[%s174 + $0x40] sm:$0xff] %v191
                %v193 = vld [vmem:[%s173 + $0x90] sm:$0xff]
                %194 = vst [vmem:[%s174 + $0x48] sm:$0xff] %v193
                %v195 = vld [vmem:[%s173 + $0x98] sm:$0xff]
                %196 = vst [vmem:[%s174 + $0x50] sm:$0xff] %v195
                %v197 = vld [vmem:[%s173 + $0xa0] sm:$0xff]
                %198 = vst [vmem:[%s174 + $0x58] sm:$0xff] %v197
                %v199 = vld [vmem:[%s173 + $0xc0] sm:$0xff]
                %200 = vst [vmem:[%s174 + $0x60] sm:$0xff] %v199
                %v201 = vld [vmem:[%s173 + $0xc8] sm:$0xff]
                %202 = vst [vmem:[%s174 + $0x68] sm:$0xff] %v201
                %v203 = vld [vmem:[%s173 + $0xd0] sm:$0xff]
                %204 = vst [vmem:[%s174 + $0x70] sm:$0xff] %v203
                %v205 = vld [vmem:[%s173 + $0xf0] sm:$0xff]
                %206 = vst [vmem:[%s174 + $0x78] sm:$0xff] %v205
                %v207 = vld [vmem:[%s173 + $0xf8] sm:$0xff]
                %208 = vst [vmem:[%s174 + $0x80] sm:$0xff] %v207
                %v209 = vld [vmem:[%s173 + $0x100] sm:$0xff]
                %210 = vst [vmem:[%s174 + $0x88] sm:$0xff] %v209
                %v211 = vld [vmem:[%s173 + $0x120] sm:$0xff]
                %212 = vst [vmem:[%s174 + $0x90] sm:$0xff] %v211
                %v213 = vld [vmem:[%s173 + $0x128] sm:$0xff]
                %214 = vst [vmem:[%s174 + $0x98] sm:$0xff] %v213
                %v215 = vld [vmem:[%s173 + $0x130] sm:$0xff]
                %216 = vst [vmem:[%s174 + $0xa0] sm:$0xff] %v215
                %v217 = vld [vmem:[%s173 + $0x150] sm:$0xff]
                %218 = vst [vmem:[%s174 + $0xa8] sm:$0xff] %v217
                %v219 = vld [vmem:[%s173 + $0x158] sm:$0xff]
                %220 = vst [vmem:[%s174 + $0xb0] sm:$0xff] %v219
                %v221 = vld [vmem:[%s173 + $0x160] sm:$0xff]
                %222 = vst [vmem:[%s174 + $0xb8] sm:$0xff] %v221
                %v223 = vld [vmem:[%s173 + $0x180] sm:$0xff]
                %224 = vst [vmem:[%s174 + $0xc0] sm:$0xff] %v223
                %v225 = vld [vmem:[%s173 + $0x188] sm:$0xff]
                %226 = vst [vmem:[%s174 + $0xc8] sm:$0xff] %v225
                %v227 = vld [vmem:[%s173 + $0x190] sm:$0xff]
                %228 = vst [vmem:[%s174 + $0xd0] sm:$0xff] %v227
                %v229 = vld [vmem:[%s173 + $0x1b0] sm:$0xff]
                %230 = vst [vmem:[%s174 + $0xd8] sm:$0xff] %v229
                %v231 = vld [vmem:[%s173 + $0x1b8] sm:$0xff]
                %232 = vst [vmem:[%s174 + $0xe0] sm:$0xff] %v231
                %v233 = vld [vmem:[%s173 + $0x1c0] sm:$0xff]
                %234 = vst [vmem:[%s174 + $0xe8] sm:$0xff] %v233
                %v235 = vld [vmem:[%s173 + $0x1e0] sm:$0xff]
                %236 = vst [vmem:[%s174 + $0xf0] sm:$0xff] %v235
                %v237 = vld [vmem:[%s173 + $0x1e8] sm:$0xff]
                %238 = vst [vmem:[%s174 + $0xf8] sm:$0xff] %v237
                %v239 = vld [vmem:[%s173 + $0x1f0] sm:$0xff]
                %240 = vst [vmem:[%s174 + $0x100] sm:$0xff] %v239
                %v241 = vld [vmem:[%s173 + $0x210] sm:$0xff]
                %242 = vst [vmem:[%s174 + $0x108] sm:$0xff] %v241
                %v243 = vld [vmem:[%s173 + $0x218] sm:$0xff]
                %244 = vst [vmem:[%s174 + $0x110] sm:$0xff] %v243
                %v245 = vld [vmem:[%s173 + $0x220] sm:$0xff]
                %246 = vst [vmem:[%s174 + $0x118] sm:$0xff] %v245
                %v247 = vld [vmem:[%s173 + $0x240] sm:$0xff]
                %248 = vst [vmem:[%s174 + $0x120] sm:$0xff] %v247
                %v249 = vld [vmem:[%s173 + $0x248] sm:$0xff]
                %250 = vst [vmem:[%s174 + $0x128] sm:$0xff] %v249
                %v251 = vld [vmem:[%s173 + $0x250] sm:$0xff]
                %252 = vst [vmem:[%s174 + $0x130] sm:$0xff] %v251
                %v253 = vld [vmem:[%s173 + $0x270] sm:$0xff]
                %254 = vst [vmem:[%s174 + $0x138] sm:$0xff] %v253
                %v255 = vld [vmem:[%s173 + $0x278] sm:$0xff]
                %256 = vst [vmem:[%s174 + $0x140] sm:$0xff] %v255
                %v257 = vld [vmem:[%s173 + $0x280] sm:$0xff]
                %258 = vst [vmem:[%s174 + $0x148] sm:$0xff] %v257
                %v259 = vld [vmem:[%s173 + $0x2a0] sm:$0xff]
                %260 = vst [vmem:[%s174 + $0x150] sm:$0xff] %v259
                %v261 = vld [vmem:[%s173 + $0x2a8] sm:$0xff]
                %262 = vst [vmem:[%s174 + $0x158] sm:$0xff] %v261
                %v263 = vld [vmem:[%s173 + $0x2b0] sm:$0xff]
                %264 = vst [vmem:[%s174 + $0x160] sm:$0xff] %v263
                %v265 = vld [vmem:[%s173 + $0x2d0] sm:$0xff]
                %266 = vst [vmem:[%s174 + $0x168] sm:$0xff] %v265
                %v267 = vld [vmem:[%s173 + $0x2d8] sm:$0xff]
                %268 = vst [vmem:[%s174 + $0x170] sm:$0xff] %v267
                %v269 = vld [vmem:[%s173 + $0x2e0] sm:$0xff]
                %270 = vst [vmem:[%s174 + $0x178] sm:$0xff] %v269
              $region37: #{generate_mode_forward.1} parent=31 // loop_footer
                %s172 = sadd.s32 1, %s168
              $region38: #{generate_mode_forward.1} parent=31 // loop_footer_branch
                %167 = sbr.rel target = $region34
              $region39: #{generate_mode_forward.1} parent=31 // loop_exit
                _
            $region32: #{generate_mode_forward.1} parent=27 // pred_fallthru
              _
            // Predicated region
            $region40: #{generate_mode_forward.1} parent=27 // pred_check
              _
            $region41: #{generate_mode_forward.1} parent=27 // pred_check_branch
              %272 = sbr.rel target = $region43
            $region42: #{generate_mode_forward.1} parent=27 // pred_region
              _
            $region43: #{generate_mode_forward.1} parent=27 // pred_fallthru
              _
          $region28: #{generate_mode_forward.1} parent=23 // pred_fallthru
            _
          %273 = vnop
        $region24: #{generate_mode_forward.1} parent=15 // pred_fallthru
          _
        // Predicated region
        $region44: #{generate_mode_forward.1} parent=15 // pred_check
          %p274 = pneg %p93
        $region45: #{generate_mode_forward.1} parent=15 // pred_check_branch
          %276 = sbr.rel (%p274) target = $region47
        $region46: #{generate_mode_forward.1} parent=15 // pred_region
          %s277 = smul.u32 3, %s17
          %p278 = scmp.lt.s32.totalorder %s277, 5
          %s279 = scalar_select %p278, %s277, 5
          %s280 = scalar_lea.vmem %s2, %s279
          %s281 = smul.u32 3, %s17
        $region47: #{generate_mode_forward.1} parent=15 // pred_fallthru
          _
      $region16: #{generate_mode_forward.1} parent=5 // pred_fallthru
        _
      %p282 = scmp.le.s32.totalorder 1, %s9
      %p283 = scmp.lt.s32.totalorder %s9, 5
      %p284 = pnand %p282, %p283
      %p285 = pneg %p284
      // Predicated region
      $region48: #{generate_mode_forward.1} parent=5 // pred_check
        _
      $region49: #{generate_mode_forward.1} parent=5 // pred_check_branch
        %287 = sbr.rel (%p284) target = $region51
      $region50: #{generate_mode_forward.1} parent=5 // pred_region
        %s288 = ssub.s32 %s9, 1
        %s289 = sand.u32 %s60, 1
        %s290 = sand.u32 %s60, 1
        %s291 = smul.addr %s290, 384
        %s292 = scalar_lea.vmem [#allocation3], %s291
        // Predicated region
        $region52: #{generate_mode_forward.1} parent=50 // pred_check
          %p293 = pneg %p73
        $region53: #{generate_mode_forward.1} parent=50 // pred_check_branch
          %295 = sbr.rel (%p293) target = $region55
        $region54: #{generate_mode_forward.1} parent=50 // pred_region
          _
        $region55: #{generate_mode_forward.1} parent=50 // pred_fallthru
          _
        %s296 = smul.u32 13, %s18
        %p297 = scmp.lt.s32.totalorder %s296, 25
        %s298 = scalar_select %p297, %s296, 25
        %s299 = smul.addr %s298, 8
        %s300 = scalar_lea.vmem %s0, %s299
        %p301 = pneg %p47
        %p302 = pneg %p44
        %s303 = sand.u32 %s60, 1
        %s304 = sand.u32 %s60, 1
        %s305 = smul.addr %s304, 384
        %s306 = scalar_lea.vmem [#allocation3], %s305
        %p307 = pneg %p73
        %p308 = pneg %p70
        %s309 = smul.u32 3, %s19
        %p310 = scmp.lt.s32.totalorder %s309, 5
        %s311 = scalar_select %p310, %s309, 5
        %s312 = scalar_lea.vmem %s2, %s311
        %p313 = pneg %p99
        %p314 = pneg %p96
        %p315 = pneg %p125
        %p316 = pneg %p122
        %s317 = smul.u32 13, %s18
        %p318 = scmp.lt.s32.totalorder %s317, 25
        %s319 = scalar_select %p318, %s317, 25
        %s320 = smul.addr %s319, 6
        %s321 = smul.addr %s320, 8
        %s322 = scalar_lea.vmem %s3, %s321
        %s323 = smul.u32 13, %s18
        %p324 = scmp.lt.s32.totalorder %s323, 25
        %s325 = scalar_select %p324, %s323, 25
        %s326 = smul.addr %s325, 8
        %s327 = scalar_lea.vmem %s0, %s326
        %s328 = smul.u32 13, %s18
        %s329 = smul.u32 3, %s19
        %s330 = smul.u32 3, %s19
        %p331 = scmp.lt.s32.totalorder %s330, 5
        %s332 = scalar_select %p331, %s330, 5
        %s333 = scalar_lea.vmem %s2, %s332
        %s334 = smul.u32 3, %s19
        %s335 = smul.u32 13, %s18
        %p336 = scmp.lt.s32.totalorder %s335, 25
        %s337 = scalar_select %p336, %s335, 25
        %s338 = smul.addr %s337, 6
        %s339 = smul.addr %s338, 8
        %s340 = scalar_lea.vmem %s3, %s339
        %s341 = smul.u32 13, %s18
        %v342 = vld [vmem:[%s327] sm:$0xff]
        %v343 = vld [vmem:[%s327 + $0x8] sm:$0xff]
        %v344 = vld [vmem:[%s327 + $0x10] sm:$0xff]
        %v345 = vld [vmem:[%s327 + $0x18] sm:$0xff]
        %v346 = vld [vmem:[%s327 + $0x20] sm:$0xff]
        %v347 = vld [vmem:[%s327 + $0x28] sm:$0xff]
        %v348 = vld [vmem:[%s327 + $0x30] sm:$0xff]
        %v349 = vld [vmem:[%s327 + $0x38] sm:$0xff]
        %v350 = vld [vmem:[%s327 + $0x40] sm:$0xff]
        %v351 = vld [vmem:[%s327 + $0x48] sm:$0xff]
        %v352 = vld [vmem:[%s327 + $0x50] sm:$0xff]
        %v353 = vld [vmem:[%s327 + $0x58] sm:$0xff]
        %v354 = vld [vmem:[%s327 + $0x60] sm:$0xff]
        %v355 = vld [vmem:[%s292] sm:$0xff]
        %v356 = vld [vmem:[%s292 + $0x8] sm:$0xff]
        %v357 = vld [vmem:[%s292 + $0x10] sm:$0xff]
        %v358 = vld [vmem:[%s292 + $0x18] sm:$0xff]
        %v359 = vld [vmem:[%s292 + $0x20] sm:$0xff]
        %v360 = vld [vmem:[%s292 + $0x28] sm:$0xff]
        %v361 = vld [vmem:[%s292 + $0x30] sm:$0xff]
        %v362 = vld [vmem:[%s292 + $0x38] sm:$0xff]
        %v363 = vld [vmem:[%s292 + $0x40] sm:$0xff]
        %v364 = vld [vmem:[%s292 + $0x48] sm:$0xff]
        %v365 = vld [vmem:[%s292 + $0x50] sm:$0xff]
        %v366 = vld [vmem:[%s292 + $0x58] sm:$0xff]
        %v367 = vld [vmem:[%s292 + $0x60] sm:$0xff]
        %v368 = vld [vmem:[%s292 + $0x68] sm:$0xff]
        %v369 = vld [vmem:[%s292 + $0x70] sm:$0xff]
        %v370 = vld [vmem:[%s292 + $0x78] sm:$0xff]
        %v371 = vld [vmem:[%s292 + $0x80] sm:$0xff]
        %v372 = vld [vmem:[%s292 + $0x88] sm:$0xff]
        %v373 = vld [vmem:[%s292 + $0x90] sm:$0xff]
        %v374 = vld [vmem:[%s292 + $0x98] sm:$0xff]
        %v375 = vld [vmem:[%s292 + $0xa0] sm:$0xff]
        %v376 = vld [vmem:[%s292 + $0xa8] sm:$0xff]
        %v377 = vld [vmem:[%s292 + $0xb0] sm:$0xff]
        %v378 = vld [vmem:[%s292 + $0xb8] sm:$0xff]
        %v379 = vld [vmem:[%s292 + $0xc0] sm:$0xff]
        %v380 = vld [vmem:[%s292 + $0xc8] sm:$0xff]
        %v381 = vld [vmem:[%s292 + $0xd0] sm:$0xff]
        %v382 = vld [vmem:[%s292 + $0xd8] sm:$0xff]
        %v383 = vld [vmem:[%s292 + $0xe0] sm:$0xff]
        %v384 = vld [vmem:[%s292 + $0xe8] sm:$0xff]
        %v385 = vld [vmem:[%s292 + $0xf0] sm:$0xff]
        %v386 = vld [vmem:[%s292 + $0xf8] sm:$0xff]
        %v387 = vld [vmem:[%s292 + $0x100] sm:$0xff]
        %v388 = vld [vmem:[%s292 + $0x108] sm:$0xff]
        %v389 = vld [vmem:[%s292 + $0x110] sm:$0xff]
        %v390 = vld [vmem:[%s292 + $0x118] sm:$0xff]
        %v391 = vld [vmem:[%s292 + $0x120] sm:$0xff]
        %v392 = vld [vmem:[%s292 + $0x128] sm:$0xff]
        %v393 = vld [vmem:[%s292 + $0x130] sm:$0xff]
        %v394 = vld [vmem:[%s292 + $0x138] sm:$0xff]
        %v395 = vld [vmem:[%s292 + $0x140] sm:$0xff]
        %v396 = vld [vmem:[%s292 + $0x148] sm:$0xff]
        %v397 = vld [vmem:[%s292 + $0x150] sm:$0xff]
        %v398 = vld [vmem:[%s292 + $0x158] sm:$0xff]
        %v399 = vld [vmem:[%s292 + $0x160] sm:$0xff]
        %v400 = vld [vmem:[%s292 + $0x168] sm:$0xff]
        %v401 = vld [vmem:[%s292 + $0x170] sm:$0xff]
        %v402 = vld [vmem:[%s292 + $0x178] sm:$0xff]
        %v403 = vld [vmem:[%s333] sm:$0x7]
        %v405 = vlaneseq
        %v406 = vshrl.u32 %v405, 7
        %v407 = vsub.s32 0, %v406
        %v408 = vrot.slane %v403, %v407
        %v409 = vlaneseq
        %v410 = vshrl.u32 %v409, 7
        %v411 = vsub.s32 1, %v410
        %v412 = vrot.slane %v403, %v411
        %v413 = vlaneseq
        %v414 = vshrl.u32 %v413, 7
        %v415 = vsub.s32 2, %v414
        %v416 = vrot.slane %v403, %v415
        %420 = vmatprep.subr.mxu0 %v401
        %421 = vmatpush1.msra.mxu0 %v400
        %422 = vmatprep.subr.mxu0 %v398
        %423 = vmatpush1.msra.mxu0 %v397
        %424 = vmatprep.subr.mxu0 %v395
        %425 = vmatpush1.msra.mxu0 %v394
        %426 = vmatprep.subr.mxu0 %v392
        %427 = vmatpush1.msra.mxu0 %v391
        %428 = vmatprep.subr.mxu0 %v389
        %429 = vmatpush1.msra.mxu0 %v388
        %430 = vmatprep.subr.mxu0 %v386
        %431 = vmatpush1.msra.mxu0 %v385
        %432 = vmatprep.subr.mxu0 %v383
        %433 = vmatpush1.msra.mxu0 %v382
        %434 = vmatprep.subr.mxu0 %v380
        %435 = vmatpush1.msra.mxu0 %v379
        %436 = vmatprep.subr.mxu0 %v377
        %437 = vmatpush1.msra.mxu0 %v376
        %438 = vmatprep.subr.mxu0 %v374
        %439 = vmatpush1.msra.mxu0 %v373
        %440 = vmatprep.subr.mxu0 %v371
        %441 = vmatpush1.msra.mxu0 %v370
        %442 = vmatprep.subr.mxu0 %v368
        %443 = vmatpush1.msra.mxu0 %v367
        %444 = vmatprep.subr.mxu0 %v365
        %445 = vmatpush1.msra.mxu0 %v364
        %446 = vmatprep.subr.mxu0 %v362
        %447 = vmatpush1.msra.mxu0 %v361
        %448 = vmatprep.subr.mxu0 %v359
        %449 = vmatpush1.msra.mxu0 %v358
        %450 = vmatprep.subr.mxu0 %v356
        %451 = vmatpush1.msra.mxu0 %v355
        %452 = vmatprep.subr.mxu0 0.0
        %453 = vmatpush2.msra.mxu0 0.0
        %454 = vmatprep.subr.mxu0 0.0
        %455 = vmatpush2.msra.mxu0 0.0
        %456 = vmatprep.subr.mxu0 0.0
        %457 = vmatpush2.msra.mxu0 0.0
        %458 = vmatprep.subr.mxu0 0.0
        %459 = vmatpush2.msra.mxu0 0.0
        %460 = vmatprep.subr.mxu0 0.0
        %461 = vmatpush2.msra.mxu0 0.0
        %462 = vmatprep.subr.mxu0 0.0
        %463 = vmatpush2.msra.mxu0 0.0
        %464 = vmatprep.subr.mxu0 0.0
        %465 = vmatpush2.msra.mxu0 0.0
        %466 = vmatprep.subr.mxu0 0.0
        %467 = vmatpush2.msra.mxu0 0.0
        %468 = vmatprep.subr.mxu0 0.0
        %469 = vmatpush2.msra.mxu0 0.0
        %470 = vmatprep.subr.mxu0 0.0
        %471 = vmatpush2.msra.mxu0 0.0
        %472 = vmatprep.subr.mxu0 0.0
        %473 = vmatpush2.msra.mxu0 0.0
        %474 = vmatprep.subr.mxu0 0.0
        %475 = vmatpush2.msra.mxu0 0.0
        %476 = vmatprep.subr.mxu0 0.0
        %477 = vmatpush2.msra.mxu0 0.0
        %478 = vmatprep.subr.mxu0 0.0
        %479 = vmatpush2.msra.mxu0 0.0
        %480 = vmatprep.subr.mxu0 0.0
        %481 = vmatpush2.msra.mxu0 0.0
        %482 = vmatprep.subr.mxu0 0.0
        %483 = vmatpush2.msra.mxu0 0.0
        %484 = vmatprep.mubr.f32.mxu0 0.0
        %485 = vmatmul.mubr.f32.gmra.mxu0 %v342
        %v486 = vpop.f32.mrf.mxu0
        %v487 = vadd.f32 %v408, %v486
        %v488 = vpop.f32.mrf.mxu0
        %v489 = vadd.f32 %v412, %v488
        %490 = vmatprep.mubr.f32.mxu0 0.0
        %491 = vmatmul.mubr.f32.gmra.mxu0 %v343
        %v492 = vpop.f32.mrf.mxu0
        %v493 = vadd.f32 %v408, %v492
        %v494 = vpop.f32.mrf.mxu0
        %v495 = vadd.f32 %v412, %v494
        %496 = vmatprep.mubr.f32.mxu0 0.0
        %497 = vmatmul.mubr.f32.gmra.mxu0 %v344
        %v498 = vpop.f32.mrf.mxu0
        %v499 = vadd.f32 %v408, %v498
        %v500 = vpop.f32.mrf.mxu0
        %v501 = vadd.f32 %v412, %v500
        %502 = vmatprep.mubr.f32.mxu0 0.0
        %503 = vmatmul.mubr.f32.gmra.mxu0 %v345
        %v504 = vpop.f32.mrf.mxu0
        %v505 = vadd.f32 %v408, %v504
        %v506 = vpop.f32.mrf.mxu0
        %v507 = vadd.f32 %v412, %v506
        %508 = vmatprep.mubr.f32.mxu0 0.0
        %509 = vmatmul.mubr.f32.gmra.mxu0 %v346
        %v510 = vpop.f32.mrf.mxu0
        %v511 = vadd.f32 %v408, %v510
        %v512 = vpop.f32.mrf.mxu0
        %v513 = vadd.f32 %v412, %v512
        %514 = vmatprep.mubr.f32.mxu0 0.0
        %515 = vmatmul.mubr.f32.gmra.mxu0 %v347
        %v516 = vpop.f32.mrf.mxu0
        %v517 = vadd.f32 %v408, %v516
        %v518 = vpop.f32.mrf.mxu0
        %v519 = vadd.f32 %v412, %v518
        %520 = vmatprep.mubr.f32.mxu0 0.0
        %521 = vmatmul.mubr.f32.gmra.mxu0 %v348
        %v522 = vpop.f32.mrf.mxu0
        %v523 = vadd.f32 %v408, %v522
        %v524 = vpop.f32.mrf.mxu0
        %v525 = vadd.f32 %v412, %v524
        %526 = vmatprep.mubr.f32.mxu0 0.0
        %527 = vmatmul.mubr.f32.gmra.mxu0 %v349
        %v528 = vpop.f32.mrf.mxu0
        %v529 = vadd.f32 %v408, %v528
        %v530 = vpop.f32.mrf.mxu0
        %v531 = vadd.f32 %v412, %v530
        %532 = vmatprep.mubr.f32.mxu0 0.0
        %533 = vmatmul.mubr.f32.gmra.mxu0 %v350
        %v534 = vpop.f32.mrf.mxu0
        %v535 = vadd.f32 %v408, %v534
        %v536 = vpop.f32.mrf.mxu0
        %v537 = vadd.f32 %v412, %v536
        %538 = vmatprep.mubr.f32.mxu0 0.0
        %539 = vmatmul.mubr.f32.gmra.mxu0 %v351
        %v540 = vpop.f32.mrf.mxu0
        %v541 = vadd.f32 %v408, %v540
        %v542 = vpop.f32.mrf.mxu0
        %v543 = vadd.f32 %v412, %v542
        %544 = vmatprep.mubr.f32.mxu0 0.0
        %545 = vmatmul.mubr.f32.gmra.mxu0 %v352
        %v546 = vpop.f32.mrf.mxu0
        %v547 = vadd.f32 %v408, %v546
        %v548 = vpop.f32.mrf.mxu0
        %v549 = vadd.f32 %v412, %v548
        %550 = vmatprep.mubr.f32.mxu0 0.0
        %551 = vmatmul.mubr.f32.gmra.mxu0 %v353
        %v552 = vpop.f32.mrf.mxu0
        %v553 = vadd.f32 %v408, %v552
        %v554 = vpop.f32.mrf.mxu0
        %v555 = vadd.f32 %v412, %v554
        %556 = vmatprep.mubr.f32.mxu0 0.0
        %557 = vmatmul.mubr.f32.gmra.mxu0 %v354
        %v558 = vpop.f32.mrf.mxu0
        %v559 = vadd.f32 %v408, %v558
        %v560 = vpop.f32.mrf.mxu0
        %v561 = vadd.f32 %v412, %v560
        %562 = vdwg.mxu0
        %563 = vmatprep.subr.mxu0 0.0
        %564 = vmatpush1.msra.mxu0 %v402
        %565 = vmatprep.subr.mxu0 0.0
        %566 = vmatpush1.msra.mxu0 %v399
        %567 = vmatprep.subr.mxu0 0.0
        %568 = vmatpush1.msra.mxu0 %v396
        %569 = vmatprep.subr.mxu0 0.0
        %570 = vmatpush1.msra.mxu0 %v393
        %571 = vmatprep.subr.mxu0 0.0
        %572 = vmatpush1.msra.mxu0 %v390
        %573 = vmatprep.subr.mxu0 0.0
        %574 = vmatpush1.msra.mxu0 %v387
        %575 = vmatprep.subr.mxu0 0.0
        %576 = vmatpush1.msra.mxu0 %v384
        %577 = vmatprep.subr.mxu0 0.0
        %578 = vmatpush1.msra.mxu0 %v381
        %579 = vmatprep.subr.mxu0 0.0
        %580 = vmatpush1.msra.mxu0 %v378
        %581 = vmatprep.subr.mxu0 0.0
        %582 = vmatpush1.msra.mxu0 %v375
        %583 = vmatprep.subr.mxu0 0.0
        %584 = vmatpush1.msra.mxu0 %v372
        %585 = vmatprep.subr.mxu0 0.0
        %586 = vmatpush1.msra.mxu0 %v369
        %587 = vmatprep.subr.mxu0 0.0
        %588 = vmatpush1.msra.mxu0 %v366
        %589 = vmatprep.subr.mxu0 0.0
        %590 = vmatpush1.msra.mxu0 %v363
        %591 = vmatprep.subr.mxu0 0.0
        %592 = vmatpush1.msra.mxu0 %v360
        %593 = vmatprep.subr.mxu0 0.0
        %594 = vmatpush1.msra.mxu0 %v357
        %595 = vmatprep.subr.mxu0 0.0
        %596 = vmatpush2.msra.mxu0 0.0
        %597 = vmatprep.subr.mxu0 0.0
        %598 = vmatpush2.msra.mxu0 0.0
        %599 = vmatprep.subr.mxu0 0.0
        %600 = vmatpush2.msra.mxu0 0.0
        %601 = vmatprep.subr.mxu0 0.0
        %602 = vmatpush2.msra.mxu0 0.0
        %603 = vmatprep.subr.mxu0 0.0
        %604 = vmatpush2.msra.mxu0 0.0
        %605 = vmatprep.subr.mxu0 0.0
        %606 = vmatpush2.msra.mxu0 0.0
        %607 = vmatprep.subr.mxu0 0.0
        %608 = vmatpush2.msra.mxu0 0.0
        %609 = vmatprep.subr.mxu0 0.0
        %610 = vmatpush2.msra.mxu0 0.0
        %611 = vmatprep.subr.mxu0 0.0
        %612 = vmatpush2.msra.mxu0 0.0
        %613 = vmatprep.subr.mxu0 0.0
        %614 = vmatpush2.msra.mxu0 0.0
        %615 = vmatprep.subr.mxu0 0.0
        %616 = vmatpush2.msra.mxu0 0.0
        %617 = vmatprep.subr.mxu0 0.0
        %618 = vmatpush2.msra.mxu0 0.0
        %619 = vmatprep.subr.mxu0 0.0
        %620 = vmatpush2.msra.mxu0 0.0
        %621 = vmatprep.subr.mxu0 0.0
        %622 = vmatpush2.msra.mxu0 0.0
        %623 = vmatprep.subr.mxu0 0.0
        %624 = vmatpush2.msra.mxu0 0.0
        %625 = vmatprep.subr.mxu0 0.0
        %626 = vmatpush2.msra.mxu0 0.0
        %627 = vmatprep.mubr.f32.mxu0 0.0
        %628 = vmatmul.mubr.f32.gmra.mxu0 %v342
        %v629 = vpop.f32.mrf.mxu0
        %v630 = vadd.f32 %v416, %v629
        %v631 = vpop.f32.mrf.mxu0
        %632 = vmatprep.mubr.f32.mxu0 0.0
        %633 = vmatmul.mubr.f32.gmra.mxu0 %v343
        %v634 = vpop.f32.mrf.mxu0
        %v635 = vadd.f32 %v416, %v634
        %v636 = vpop.f32.mrf.mxu0
        %637 = vmatprep.mubr.f32.mxu0 0.0
        %638 = vmatmul.mubr.f32.gmra.mxu0 %v344
        %v639 = vpop.f32.mrf.mxu0
        %v640 = vadd.f32 %v416, %v639
        %v641 = vpop.f32.mrf.mxu0
        %642 = vmatprep.mubr.f32.mxu0 0.0
        %643 = vmatmul.mubr.f32.gmra.mxu0 %v345
        %v644 = vpop.f32.mrf.mxu0
        %v645 = vadd.f32 %v416, %v644
        %v646 = vpop.f32.mrf.mxu0
        %647 = vmatprep.mubr.f32.mxu0 0.0
        %648 = vmatmul.mubr.f32.gmra.mxu0 %v346
        %v649 = vpop.f32.mrf.mxu0
        %v650 = vadd.f32 %v416, %v649
        %v651 = vpop.f32.mrf.mxu0
        %652 = vmatprep.mubr.f32.mxu0 0.0
        %653 = vmatmul.mubr.f32.gmra.mxu0 %v347
        %v654 = vpop.f32.mrf.mxu0
        %v655 = vadd.f32 %v416, %v654
        %v656 = vpop.f32.mrf.mxu0
        %657 = vmatprep.mubr.f32.mxu0 0.0
        %658 = vmatmul.mubr.f32.gmra.mxu0 %v348
        %v659 = vpop.f32.mrf.mxu0
        %v660 = vadd.f32 %v416, %v659
        %v661 = vpop.f32.mrf.mxu0
        %662 = vmatprep.mubr.f32.mxu0 0.0
        %663 = vmatmul.mubr.f32.gmra.mxu0 %v349
        %v664 = vpop.f32.mrf.mxu0
        %v665 = vadd.f32 %v416, %v664
        %v666 = vpop.f32.mrf.mxu0
        %667 = vmatprep.mubr.f32.mxu0 0.0
        %668 = vmatmul.mubr.f32.gmra.mxu0 %v350
        %v669 = vpop.f32.mrf.mxu0
        %v670 = vadd.f32 %v416, %v669
        %v671 = vpop.f32.mrf.mxu0
        %672 = vmatprep.mubr.f32.mxu0 0.0
        %673 = vmatmul.mubr.f32.gmra.mxu0 %v351
        %v674 = vpop.f32.mrf.mxu0
        %v675 = vadd.f32 %v416, %v674
        %v676 = vpop.f32.mrf.mxu0
        %677 = vmatprep.mubr.f32.mxu0 0.0
        %678 = vmatmul.mubr.f32.gmra.mxu0 %v352
        %v679 = vpop.f32.mrf.mxu0
        %v680 = vadd.f32 %v416, %v679
        %v681 = vpop.f32.mrf.mxu0
        %682 = vmatprep.mubr.f32.mxu0 0.0
        %683 = vmatmul.mubr.f32.gmra.mxu0 %v353
        %v684 = vpop.f32.mrf.mxu0
        %v685 = vadd.f32 %v416, %v684
        %v686 = vpop.f32.mrf.mxu0
        %687 = vmatprep.mubr.f32.mxu0 0.0
        %688 = vmatmul.mubr.f32.gmra.mxu0 %v354
        %v689 = vpop.f32.mrf.mxu0
        %v690 = vadd.f32 %v416, %v689
        %v691 = vpop.f32.mrf.mxu0
        %692 = vdwg.mxu0
        %v693 = vmax.f32 %v487, %v489
        %v694 = vmax.f32 %v693, %v630
        %695 = vmax.xlane.f32.xlu0 %v694
        %v696 = vpop.xlane.xlu0 %695
        %v697 = vmax.f32 %v493, %v495
        %v698 = vmax.f32 %v697, %v635
        %699 = vmax.xlane.f32.xlu0 %v698
        %v700 = vpop.xlane.xlu0 %699
        %v701 = vmax.f32 %v499, %v501
        %v702 = vmax.f32 %v701, %v640
        %703 = vmax.xlane.f32.xlu0 %v702
        %v704 = vpop.xlane.xlu0 %703
        %v705 = vmax.f32 %v505, %v507
        %v706 = vmax.f32 %v705, %v645
        %707 = vmax.xlane.f32.xlu0 %v706
        %v708 = vpop.xlane.xlu0 %707
        %v709 = vmax.f32 %v511, %v513
        %v710 = vmax.f32 %v709, %v650
        %711 = vmax.xlane.f32.xlu0 %v710
        %v712 = vpop.xlane.xlu0 %711
        %v713 = vmax.f32 %v517, %v519
        %v714 = vmax.f32 %v713, %v655
        %715 = vmax.xlane.f32.xlu0 %v714
        %v716 = vpop.xlane.xlu0 %715
        %v717 = vmax.f32 %v523, %v525
        %v718 = vmax.f32 %v717, %v660
        %719 = vmax.xlane.f32.xlu0 %v718
        %v720 = vpop.xlane.xlu0 %719
        %v721 = vmax.f32 %v529, %v531
        %v722 = vmax.f32 %v721, %v665
        %723 = vmax.xlane.f32.xlu0 %v722
        %v724 = vpop.xlane.xlu0 %723
        %v725 = vmax.f32 %v535, %v537
        %v726 = vmax.f32 %v725, %v670
        %727 = vmax.xlane.f32.xlu0 %v726
        %v728 = vpop.xlane.xlu0 %727
        %v729 = vmax.f32 %v541, %v543
        %v730 = vmax.f32 %v729, %v675
        %731 = vmax.xlane.f32.xlu0 %v730
        %v732 = vpop.xlane.xlu0 %731
        %v733 = vmax.f32 %v547, %v549
        %v734 = vmax.f32 %v733, %v680
        %735 = vmax.xlane.f32.xlu0 %v734
        %v736 = vpop.xlane.xlu0 %735
        %v737 = vmax.f32 %v553, %v555
        %v738 = vmax.f32 %v737, %v685
        %739 = vmax.xlane.f32.xlu0 %v738
        %v740 = vpop.xlane.xlu0 %739
        %v741 = vmax.f32 %v559, %v561
        %v742 = vmax.f32 %v741, %v690
        %743 = vmax.xlane.f32.xlu0 %v742
        %v744 = vpop.xlane.xlu0 %743
        %p745 = scmp.eq.s32.totalorder %s19, 0
        // Predicated region
        $region56: #{generate_mode_forward.1} parent=50 // pred_check
          %p746 = pneg %p745
        $region57: #{generate_mode_forward.1} parent=50 // pred_check_branch
          %748 = sbr.rel (%p746) target = $region59
        $region58: #{generate_mode_forward.1} parent=50 // pred_region
          %vm749 = vcmask 7168
          %750 = vst.msk [vmem:[#allocation2] sm:$0xff] %vm749, %v696
          %751 = vst.msk [vmem:[#allocation2 + $0x8] sm:$0xff] %vm749, %v700
          %752 = vst.msk [vmem:[#allocation2 + $0x10] sm:$0xff] %vm749, %v704
          %753 = vst.msk [vmem:[#allocation2 + $0x18] sm:$0xff] %vm749, %v708
          %754 = vst.msk [vmem:[#allocation2 + $0x20] sm:$0xff] %vm749, %v712
          %755 = vst.msk [vmem:[#allocation2 + $0x28] sm:$0xff] %vm749, %v716
          %756 = vst.msk [vmem:[#allocation2 + $0x30] sm:$0xff] %vm749, %v720
          %757 = vst.msk [vmem:[#allocation2 + $0x38] sm:$0xff] %vm749, %v724
          %758 = vst.msk [vmem:[#allocation2 + $0x40] sm:$0xff] %vm749, %v728
          %759 = vst.msk [vmem:[#allocation2 + $0x48] sm:$0xff] %vm749, %v732
          %760 = vst.msk [vmem:[#allocation2 + $0x50] sm:$0xff] %vm749, %v736
          %761 = vst.msk [vmem:[#allocation2 + $0x58] sm:$0xff] %vm749, %v740
          %762 = vst.msk [vmem:[#allocation2 + $0x60] sm:$0xff] %vm749, %v744
        $region59: #{generate_mode_forward.1} parent=50 // pred_fallthru
          _
        %p763 = scmp.gt.s32.totalorder %s19, 0
        // Predicated region
        $region60: #{generate_mode_forward.1} parent=50 // pred_check
          %p764 = pneg %p763
        $region61: #{generate_mode_forward.1} parent=50 // pred_check_branch
          %766 = sbr.rel (%p764) target = $region63
        $region62: #{generate_mode_forward.1} parent=50 // pred_region
          %v767 = vld [vmem:[#allocation2] sm:$0xff]
          %v768 = vld [vmem:[#allocation2 + $0x8] sm:$0xff]
          %v769 = vld [vmem:[#allocation2 + $0x10] sm:$0xff]
          %v770 = vld [vmem:[#allocation2 + $0x18] sm:$0xff]
          %v771 = vld [vmem:[#allocation2 + $0x20] sm:$0xff]
          %v772 = vld [vmem:[#allocation2 + $0x28] sm:$0xff]
          %v773 = vld [vmem:[#allocation2 + $0x30] sm:$0xff]
          %v774 = vld [vmem:[#allocation2 + $0x38] sm:$0xff]
          %v775 = vld [vmem:[#allocation2 + $0x40] sm:$0xff]
          %v776 = vld [vmem:[#allocation2 + $0x48] sm:$0xff]
          %v777 = vld [vmem:[#allocation2 + $0x50] sm:$0xff]
          %v778 = vld [vmem:[#allocation2 + $0x58] sm:$0xff]
          %v779 = vld [vmem:[#allocation2 + $0x60] sm:$0xff]
          %v780 = vmax.f32 %v767, %v696
          %v781 = vmax.f32 %v768, %v700
          %v782 = vmax.f32 %v769, %v704
          %v783 = vmax.f32 %v770, %v708
          %v784 = vmax.f32 %v771, %v712
          %v785 = vmax.f32 %v772, %v716
          %v786 = vmax.f32 %v773, %v720
          %v787 = vmax.f32 %v774, %v724
          %v788 = vmax.f32 %v775, %v728
          %v789 = vmax.f32 %v776, %v732
          %v790 = vmax.f32 %v777, %v736
          %v791 = vmax.f32 %v778, %v740
          %v792 = vmax.f32 %v779, %v744
          %vm793 = vcmask 7168
          %794 = vst.msk [vmem:[#allocation2] sm:$0xff] %vm793, %v780
          %795 = vst.msk [vmem:[#allocation2 + $0x8] sm:$0xff] %vm793, %v781
          %796 = vst.msk [vmem:[#allocation2 + $0x10] sm:$0xff] %vm793, %v782
          %797 = vst.msk [vmem:[#allocation2 + $0x18] sm:$0xff] %vm793, %v783
          %798 = vst.msk [vmem:[#allocation2 + $0x20] sm:$0xff] %vm793, %v784
          %799 = vst.msk [vmem:[#allocation2 + $0x28] sm:$0xff] %vm793, %v785
          %800 = vst.msk [vmem:[#allocation2 + $0x30] sm:$0xff] %vm793, %v786
          %801 = vst.msk [vmem:[#allocation2 + $0x38] sm:$0xff] %vm793, %v787
          %802 = vst.msk [vmem:[#allocation2 + $0x40] sm:$0xff] %vm793, %v788
          %803 = vst.msk [vmem:[#allocation2 + $0x48] sm:$0xff] %vm793, %v789
          %804 = vst.msk [vmem:[#allocation2 + $0x50] sm:$0xff] %vm793, %v790
          %805 = vst.msk [vmem:[#allocation2 + $0x58] sm:$0xff] %vm793, %v791
          %806 = vst.msk [vmem:[#allocation2 + $0x60] sm:$0xff] %vm793, %v792
        $region63: #{generate_mode_forward.1} parent=50 // pred_fallthru
          _
        %s807 = smul.u32 %s19, 384
        %s808 = sshra.s32 %s807, 7
        %s809 = sand.u32 %s807, 127
        %s810 = smul.addr %s808, 8
        %s811 = scalar_lea.vmem %s340, %s810
        %812 = vst [vmem:[%s811] sm:$0xff] %v487
        %813 = vst [vmem:[%s811 + $0x8] sm:$0xff] %v489
        %814 = vst [vmem:[%s811 + $0x10] sm:$0xff] %v630
        %815 = vst [vmem:[%s811 + $0x30] sm:$0xff] %v493
        %816 = vst [vmem:[%s811 + $0x38] sm:$0xff] %v495
        %817 = vst [vmem:[%s811 + $0x40] sm:$0xff] %v635
        %818 = vst [vmem:[%s811 + $0x60] sm:$0xff] %v499
        %819 = vst [vmem:[%s811 + $0x68] sm:$0xff] %v501
        %820 = vst [vmem:[%s811 + $0x70] sm:$0xff] %v640
        %821 = vst [vmem:[%s811 + $0x90] sm:$0xff] %v505
        %822 = vst [vmem:[%s811 + $0x98] sm:$0xff] %v507
        %823 = vst [vmem:[%s811 + $0xa0] sm:$0xff] %v645
        %824 = vst [vmem:[%s811 + $0xc0] sm:$0xff] %v511
        %825 = vst [vmem:[%s811 + $0xc8] sm:$0xff] %v513
        %826 = vst [vmem:[%s811 + $0xd0] sm:$0xff] %v650
        %827 = vst [vmem:[%s811 + $0xf0] sm:$0xff] %v517
        %828 = vst [vmem:[%s811 + $0xf8] sm:$0xff] %v519
        %829 = vst [vmem:[%s811 + $0x100] sm:$0xff] %v655
        %830 = vst [vmem:[%s811 + $0x120] sm:$0xff] %v523
        %831 = vst [vmem:[%s811 + $0x128] sm:$0xff] %v525
        %832 = vst [vmem:[%s811 + $0x130] sm:$0xff] %v660
        %833 = vst [vmem:[%s811 + $0x150] sm:$0xff] %v529
        %834 = vst [vmem:[%s811 + $0x158] sm:$0xff] %v531
        %835 = vst [vmem:[%s811 + $0x160] sm:$0xff] %v665
        %836 = vst [vmem:[%s811 + $0x180] sm:$0xff] %v535
        %837 = vst [vmem:[%s811 + $0x188] sm:$0xff] %v537
        %838 = vst [vmem:[%s811 + $0x190] sm:$0xff] %v670
        %839 = vst [vmem:[%s811 + $0x1b0] sm:$0xff] %v541
        %840 = vst [vmem:[%s811 + $0x1b8] sm:$0xff] %v543
        %841 = vst [vmem:[%s811 + $0x1c0] sm:$0xff] %v675
        %842 = vst [vmem:[%s811 + $0x1e0] sm:$0xff] %v547
        %843 = vst [vmem:[%s811 + $0x1e8] sm:$0xff] %v549
        %844 = vst [vmem:[%s811 + $0x1f0] sm:$0xff] %v680
        %845 = vst [vmem:[%s811 + $0x210] sm:$0xff] %v553
        %846 = vst [vmem:[%s811 + $0x218] sm:$0xff] %v555
        %847 = vst [vmem:[%s811 + $0x220] sm:$0xff] %v685
        %848 = vst [vmem:[%s811 + $0x240] sm:$0xff] %v559
        %849 = vst [vmem:[%s811 + $0x248] sm:$0xff] %v561
        %850 = vst [vmem:[%s811 + $0x250] sm:$0xff] %v690
        %p851 = scmp.eq.s32.totalorder %s19, 1
        // Predicated region
        $region64: #{generate_mode_forward.1} parent=50 // pred_check
          %p852 = pneg %p851
        $region65: #{generate_mode_forward.1} parent=50 // pred_check_branch
          %854 = sbr.rel (%p852) target = $region67
        $region66: #{generate_mode_forward.1} parent=50 // pred_region
          %v855 = vld [vmem:[%s340] sm:$0xff]
          %v856 = vld [vmem:[%s340 + $0x8] sm:$0xff]
          %v857 = vld [vmem:[%s340 + $0x10] sm:$0xff]
          %v858 = vld [vmem:[%s340 + $0x18] sm:$0xff]
          %v859 = vld [vmem:[%s340 + $0x20] sm:$0xff]
          %v860 = vld [vmem:[%s340 + $0x28] sm:$0xff]
          %v861 = vld [vmem:[%s340 + $0x30] sm:$0xff]
          %v862 = vld [vmem:[%s340 + $0x38] sm:$0xff]
          %v863 = vld [vmem:[%s340 + $0x40] sm:$0xff]
          %v864 = vld [vmem:[%s340 + $0x48] sm:$0xff]
          %v865 = vld [vmem:[%s340 + $0x50] sm:$0xff]
          %v866 = vld [vmem:[%s340 + $0x58] sm:$0xff]
          %v867 = vld [vmem:[%s340 + $0x60] sm:$0xff]
          %v868 = vld [vmem:[%s340 + $0x68] sm:$0xff]
          %v869 = vld [vmem:[%s340 + $0x70] sm:$0xff]
          %v870 = vld [vmem:[%s340 + $0x78] sm:$0xff]
          %v871 = vld [vmem:[%s340 + $0x80] sm:$0xff]
          %v872 = vld [vmem:[%s340 + $0x88] sm:$0xff]
          %v873 = vld [vmem:[%s340 + $0x90] sm:$0xff]
          %v874 = vld [vmem:[%s340 + $0x98] sm:$0xff]
          %v875 = vld [vmem:[%s340 + $0xa0] sm:$0xff]
          %v876 = vld [vmem:[%s340 + $0xa8] sm:$0xff]
          %v877 = vld [vmem:[%s340 + $0xb0] sm:$0xff]
          %v878 = vld [vmem:[%s340 + $0xb8] sm:$0xff]
          %v879 = vld [vmem:[%s340 + $0xc0] sm:$0xff]
          %v880 = vld [vmem:[%s340 + $0xc8] sm:$0xff]
          %v881 = vld [vmem:[%s340 + $0xd0] sm:$0xff]
          %v882 = vld [vmem:[%s340 + $0xd8] sm:$0xff]
          %v883 = vld [vmem:[%s340 + $0xe0] sm:$0xff]
          %v884 = vld [vmem:[%s340 + $0xe8] sm:$0xff]
          %v885 = vld [vmem:[%s340 + $0xf0] sm:$0xff]
          %v886 = vld [vmem:[%s340 + $0xf8] sm:$0xff]
          %v887 = vld [vmem:[%s340 + $0x100] sm:$0xff]
          %v888 = vld [vmem:[%s340 + $0x108] sm:$0xff]
          %v889 = vld [vmem:[%s340 + $0x110] sm:$0xff]
          %v890 = vld [vmem:[%s340 + $0x118] sm:$0xff]
          %v891 = vld [vmem:[%s340 + $0x120] sm:$0xff]
          %v892 = vld [vmem:[%s340 + $0x128] sm:$0xff]
          %v893 = vld [vmem:[%s340 + $0x130] sm:$0xff]
          %v894 = vld [vmem:[%s340 + $0x138] sm:$0xff]
          %v895 = vld [vmem:[%s340 + $0x140] sm:$0xff]
          %v896 = vld [vmem:[%s340 + $0x148] sm:$0xff]
          %v897 = vld [vmem:[%s340 + $0x150] sm:$0xff]
          %v898 = vld [vmem:[%s340 + $0x158] sm:$0xff]
          %v899 = vld [vmem:[%s340 + $0x160] sm:$0xff]
          %v900 = vld [vmem:[%s340 + $0x168] sm:$0xff]
          %v901 = vld [vmem:[%s340 + $0x170] sm:$0xff]
          %v902 = vld [vmem:[%s340 + $0x178] sm:$0xff]
          %v903 = vld [vmem:[%s340 + $0x180] sm:$0xff]
          %v904 = vld [vmem:[%s340 + $0x188] sm:$0xff]
          %v905 = vld [vmem:[%s340 + $0x190] sm:$0xff]
          %v906 = vld [vmem:[%s340 + $0x198] sm:$0xff]
          %v907 = vld [vmem:[%s340 + $0x1a0] sm:$0xff]
          %v908 = vld [vmem:[%s340 + $0x1a8] sm:$0xff]
          %v909 = vld [vmem:[%s340 + $0x1b0] sm:$0xff]
          %v910 = vld [vmem:[%s340 + $0x1b8] sm:$0xff]
          %v911 = vld [vmem:[%s340 + $0x1c0] sm:$0xff]
          %v912 = vld [vmem:[%s340 + $0x1c8] sm:$0xff]
          %v913 = vld [vmem:[%s340 + $0x1d0] sm:$0xff]
          %v914 = vld [vmem:[%s340 + $0x1d8] sm:$0xff]
          %v915 = vld [vmem:[%s340 + $0x1e0] sm:$0xff]
          %v916 = vld [vmem:[%s340 + $0x1e8] sm:$0xff]
          %v917 = vld [vmem:[%s340 + $0x1f0] sm:$0xff]
          %v918 = vld [vmem:[%s340 + $0x1f8] sm:$0xff]
          %v919 = vld [vmem:[%s340 + $0x200] sm:$0xff]
          %v920 = vld [vmem:[%s340 + $0x208] sm:$0xff]
          %v921 = vld [vmem:[%s340 + $0x210] sm:$0xff]
          %v922 = vld [vmem:[%s340 + $0x218] sm:$0xff]
          %v923 = vld [vmem:[%s340 + $0x220] sm:$0xff]
          %v924 = vld [vmem:[%s340 + $0x228] sm:$0xff]
          %v925 = vld [vmem:[%s340 + $0x230] sm:$0xff]
          %v926 = vld [vmem:[%s340 + $0x238] sm:$0xff]
          %v927 = vld [vmem:[%s340 + $0x240] sm:$0xff]
          %v928 = vld [vmem:[%s340 + $0x248] sm:$0xff]
          %v929 = vld [vmem:[%s340 + $0x250] sm:$0xff]
          %v930 = vld [vmem:[%s340 + $0x258] sm:$0xff]
          %v931 = vld [vmem:[%s340 + $0x260] sm:$0xff]
          %v932 = vld [vmem:[%s340 + $0x268] sm:$0xff]
          %v933 = vld [vmem:[#allocation2] sm:$0xff]
          %v934 = vld [vmem:[#allocation2 + $0x8] sm:$0xff]
          %v935 = vld [vmem:[#allocation2 + $0x10] sm:$0xff]
          %v936 = vld [vmem:[#allocation2 + $0x18] sm:$0xff]
          %v937 = vld [vmem:[#allocation2 + $0x20] sm:$0xff]
          %v938 = vld [vmem:[#allocation2 + $0x28] sm:$0xff]
          %v939 = vld [vmem:[#allocation2 + $0x30] sm:$0xff]
          %v940 = vld [vmem:[#allocation2 + $0x38] sm:$0xff]
          %v941 = vld [vmem:[#allocation2 + $0x40] sm:$0xff]
          %v942 = vld [vmem:[#allocation2 + $0x48] sm:$0xff]
          %v943 = vld [vmem:[#allocation2 + $0x50] sm:$0xff]
          %v944 = vld [vmem:[#allocation2 + $0x58] sm:$0xff]
          %v945 = vld [vmem:[#allocation2 + $0x60] sm:$0xff]
          %947 = vset.pattern.permute.xlu0 0
          %948 = vperm.xlu0 %947, %v933
          %v949 = vpop.permute.xlu0 %948
          %952 = vset.pattern.permute.xlu0 0
          %953 = vperm.xlu0 %952, %v934
          %v954 = vpop.permute.xlu0 %953
          %957 = vset.pattern.permute.xlu0 0
          %958 = vperm.xlu0 %957, %v935
          %v959 = vpop.permute.xlu0 %958
          %962 = vset.pattern.permute.xlu0 0
          %963 = vperm.xlu0 %962, %v936
          %v964 = vpop.permute.xlu0 %963
          %967 = vset.pattern.permute.xlu0 0
          %968 = vperm.xlu0 %967, %v937
          %v969 = vpop.permute.xlu0 %968
          %972 = vset.pattern.permute.xlu0 0
          %973 = vperm.xlu0 %972, %v938
          %v974 = vpop.permute.xlu0 %973
          %977 = vset.pattern.permute.xlu0 0
          %978 = vperm.xlu0 %977, %v939
          %v979 = vpop.permute.xlu0 %978
          %982 = vset.pattern.permute.xlu0 0
          %983 = vperm.xlu0 %982, %v940
          %v984 = vpop.permute.xlu0 %983
          %987 = vset.pattern.permute.xlu0 0
          %988 = vperm.xlu0 %987, %v941
          %v989 = vpop.permute.xlu0 %988
          %992 = vset.pattern.permute.xlu0 0
          %993 = vperm.xlu0 %992, %v942
          %v994 = vpop.permute.xlu0 %993
          %997 = vset.pattern.permute.xlu0 0
          %998 = vperm.xlu0 %997, %v943
          %v999 = vpop.permute.xlu0 %998
          %1002 = vset.pattern.permute.xlu0 0
          %1003 = vperm.xlu0 %1002, %v944
          %v1004 = vpop.permute.xlu0 %1003
          %1007 = vset.pattern.permute.xlu0 0
          %1008 = vperm.xlu0 %1007, %v945
          %v1009 = vpop.permute.xlu0 %1008
          %v1011 = vsub.f32 %v855, %v949
          %v1012 = vsub.f32 %v856, %v949
          %v1013 = vsub.f32 %v857, %v949
          %v1014 = vsub.f32 %v858, %v949
          %v1015 = vsub.f32 %v859, %v949
          %v1016 = vsub.f32 %v860, %v949
          %v1017 = vsub.f32 %v861, %v954
          %v1018 = vsub.f32 %v862, %v954
          %v1019 = vsub.f32 %v863, %v954
          %v1020 = vsub.f32 %v864, %v954
          %v1021 = vsub.f32 %v865, %v954
          %v1022 = vsub.f32 %v866, %v954
          %v1023 = vsub.f32 %v867, %v959
          %v1024 = vsub.f32 %v868, %v959
          %v1025 = vsub.f32 %v869, %v959
          %v1026 = vsub.f32 %v870, %v959
          %v1027 = vsub.f32 %v871, %v959
          %v1028 = vsub.f32 %v872, %v959
          %v1029 = vsub.f32 %v873, %v964
          %v1030 = vsub.f32 %v874, %v964
          %v1031 = vsub.f32 %v875, %v964
          %v1032 = vsub.f32 %v876, %v964
          %v1033 = vsub.f32 %v877, %v964
          %v1034 = vsub.f32 %v878, %v964
          %v1035 = vsub.f32 %v879, %v969
          %v1036 = vsub.f32 %v880, %v969
          %v1037 = vsub.f32 %v881, %v969
          %v1038 = vsub.f32 %v882, %v969
          %v1039 = vsub.f32 %v883, %v969
          %v1040 = vsub.f32 %v884, %v969
          %v1041 = vsub.f32 %v885, %v974
          %v1042 = vsub.f32 %v886, %v974
          %v1043 = vsub.f32 %v887, %v974
          %v1044 = vsub.f32 %v888, %v974
          %v1045 = vsub.f32 %v889, %v974
          %v1046 = vsub.f32 %v890, %v974
          %v1047 = vsub.f32 %v891, %v979
          %v1048 = vsub.f32 %v892, %v979
          %v1049 = vsub.f32 %v893, %v979
          %v1050 = vsub.f32 %v894, %v979
          %v1051 = vsub.f32 %v895, %v979
          %v1052 = vsub.f32 %v896, %v979
          %v1053 = vsub.f32 %v897, %v984
          %v1054 = vsub.f32 %v898, %v984
          %v1055 = vsub.f32 %v899, %v984
          %v1056 = vsub.f32 %v900, %v984
          %v1057 = vsub.f32 %v901, %v984
          %v1058 = vsub.f32 %v902, %v984
          %v1059 = vsub.f32 %v903, %v989
          %v1060 = vsub.f32 %v904, %v989
          %v1061 = vsub.f32 %v905, %v989
          %v1062 = vsub.f32 %v906, %v989
          %v1063 = vsub.f32 %v907, %v989
          %v1064 = vsub.f32 %v908, %v989
          %v1065 = vsub.f32 %v909, %v994
          %v1066 = vsub.f32 %v910, %v994
          %v1067 = vsub.f32 %v911, %v994
          %v1068 = vsub.f32 %v912, %v994
          %v1069 = vsub.f32 %v913, %v994
          %v1070 = vsub.f32 %v914, %v994
          %v1071 = vsub.f32 %v915, %v999
          %v1072 = vsub.f32 %v916, %v999
          %v1073 = vsub.f32 %v917, %v999
          %v1074 = vsub.f32 %v918, %v999
          %v1075 = vsub.f32 %v919, %v999
          %v1076 = vsub.f32 %v920, %v999
          %v1077 = vsub.f32 %v921, %v1004
          %v1078 = vsub.f32 %v922, %v1004
          %v1079 = vsub.f32 %v923, %v1004
          %v1080 = vsub.f32 %v924, %v1004
          %v1081 = vsub.f32 %v925, %v1004
          %v1082 = vsub.f32 %v926, %v1004
          %v1083 = vsub.f32 %v927, %v1009
          %v1084 = vsub.f32 %v928, %v1009
          %v1085 = vsub.f32 %v929, %v1009
          %v1086 = vsub.f32 %v930, %v1009
          %v1087 = vsub.f32 %v931, %v1009
          %v1088 = vsub.f32 %v932, %v1009
          %v1089 = vmul.f32 %v1011, 1.442695
          %v1090 = vpow.pop %v1089
          %v1091 = vmul.f32 %v1012, 1.442695
          %v1092 = vpow.pop %v1091
          %v1093 = vmul.f32 %v1013, 1.442695
          %v1094 = vpow.pop %v1093
          %v1095 = vmul.f32 %v1014, 1.442695
          %v1096 = vpow.pop %v1095
          %v1097 = vmul.f32 %v1015, 1.442695
          %v1098 = vpow.pop %v1097
          %v1099 = vmul.f32 %v1016, 1.442695
          %v1100 = vpow.pop %v1099
          %v1101 = vmul.f32 %v1017, 1.442695
          %v1102 = vpow.pop %v1101
          %v1103 = vmul.f32 %v1018, 1.442695
          %v1104 = vpow.pop %v1103
          %v1105 = vmul.f32 %v1019, 1.442695
          %v1106 = vpow.pop %v1105
          %v1107 = vmul.f32 %v1020, 1.442695
          %v1108 = vpow.pop %v1107
          %v1109 = vmul.f32 %v1021, 1.442695
          %v1110 = vpow.pop %v1109
          %v1111 = vmul.f32 %v1022, 1.442695
          %v1112 = vpow.pop %v1111
          %v1113 = vmul.f32 %v1023, 1.442695
          %v1114 = vpow.pop %v1113
          %v1115 = vmul.f32 %v1024, 1.442695
          %v1116 = vpow.pop %v1115
          %v1117 = vmul.f32 %v1025, 1.442695
          %v1118 = vpow.pop %v1117
          %v1119 = vmul.f32 %v1026, 1.442695
          %v1120 = vpow.pop %v1119
          %v1121 = vmul.f32 %v1027, 1.442695
          %v1122 = vpow.pop %v1121
          %v1123 = vmul.f32 %v1028, 1.442695
          %v1124 = vpow.pop %v1123
          %v1125 = vmul.f32 %v1029, 1.442695
          %v1126 = vpow.pop %v1125
          %v1127 = vmul.f32 %v1030, 1.442695
          %v1128 = vpow.pop %v1127
          %v1129 = vmul.f32 %v1031, 1.442695
          %v1130 = vpow.pop %v1129
          %v1131 = vmul.f32 %v1032, 1.442695
          %v1132 = vpow.pop %v1131
          %v1133 = vmul.f32 %v1033, 1.442695
          %v1134 = vpow.pop %v1133
          %v1135 = vmul.f32 %v1034, 1.442695
          %v1136 = vpow.pop %v1135
          %v1137 = vmul.f32 %v1035, 1.442695
          %v1138 = vpow.pop %v1137
          %v1139 = vmul.f32 %v1036, 1.442695
          %v1140 = vpow.pop %v1139
          %v1141 = vmul.f32 %v1037, 1.442695
          %v1142 = vpow.pop %v1141
          %v1143 = vmul.f32 %v1038, 1.442695
          %v1144 = vpow.pop %v1143
          %v1145 = vmul.f32 %v1039, 1.442695
          %v1146 = vpow.pop %v1145
          %v1147 = vmul.f32 %v1040, 1.442695
          %v1148 = vpow.pop %v1147
          %v1149 = vmul.f32 %v1041, 1.442695
          %v1150 = vpow.pop %v1149
          %v1151 = vmul.f32 %v1042, 1.442695
          %v1152 = vpow.pop %v1151
          %v1153 = vmul.f32 %v1043, 1.442695
          %v1154 = vpow.pop %v1153
          %v1155 = vmul.f32 %v1044, 1.442695
          %v1156 = vpow.pop %v1155
          %v1157 = vmul.f32 %v1045, 1.442695
          %v1158 = vpow.pop %v1157
          %v1159 = vmul.f32 %v1046, 1.442695
          %v1160 = vpow.pop %v1159
          %v1161 = vmul.f32 %v1047, 1.442695
          %v1162 = vpow.pop %v1161
          %v1163 = vmul.f32 %v1048, 1.442695
          %v1164 = vpow.pop %v1163
          %v1165 = vmul.f32 %v1049, 1.442695
          %v1166 = vpow.pop %v1165
          %v1167 = vmul.f32 %v1050, 1.442695
          %v1168 = vpow.pop %v1167
          %v1169 = vmul.f32 %v1051, 1.442695
          %v1170 = vpow.pop %v1169
          %v1171 = vmul.f32 %v1052, 1.442695
          %v1172 = vpow.pop %v1171
          %v1173 = vmul.f32 %v1053, 1.442695
          %v1174 = vpow.pop %v1173
          %v1175 = vmul.f32 %v1054, 1.442695
          %v1176 = vpow.pop %v1175
          %v1177 = vmul.f32 %v1055, 1.442695
          %v1178 = vpow.pop %v1177
          %v1179 = vmul.f32 %v1056, 1.442695
          %v1180 = vpow.pop %v1179
          %v1181 = vmul.f32 %v1057, 1.442695
          %v1182 = vpow.pop %v1181
          %v1183 = vmul.f32 %v1058, 1.442695
          %v1184 = vpow.pop %v1183
          %v1185 = vmul.f32 %v1059, 1.442695
          %v1186 = vpow.pop %v1185
          %v1187 = vmul.f32 %v1060, 1.442695
          %v1188 = vpow.pop %v1187
          %v1189 = vmul.f32 %v1061, 1.442695
          %v1190 = vpow.pop %v1189
          %v1191 = vmul.f32 %v1062, 1.442695
          %v1192 = vpow.pop %v1191
          %v1193 = vmul.f32 %v1063, 1.442695
          %v1194 = vpow.pop %v1193
          %v1195 = vmul.f32 %v1064, 1.442695
          %v1196 = vpow.pop %v1195
          %v1197 = vmul.f32 %v1065, 1.442695
          %v1198 = vpow.pop %v1197
          %v1199 = vmul.f32 %v1066, 1.442695
          %v1200 = vpow.pop %v1199
          %v1201 = vmul.f32 %v1067, 1.442695
          %v1202 = vpow.pop %v1201
          %v1203 = vmul.f32 %v1068, 1.442695
          %v1204 = vpow.pop %v1203
          %v1205 = vmul.f32 %v1069, 1.442695
          %v1206 = vpow.pop %v1205
          %v1207 = vmul.f32 %v1070, 1.442695
          %v1208 = vpow.pop %v1207
          %v1209 = vmul.f32 %v1071, 1.442695
          %v1210 = vpow.pop %v1209
          %v1211 = vmul.f32 %v1072, 1.442695
          %v1212 = vpow.pop %v1211
          %v1213 = vmul.f32 %v1073, 1.442695
          %v1214 = vpow.pop %v1213
          %v1215 = vmul.f32 %v1074, 1.442695
          %v1216 = vpow.pop %v1215
          %v1217 = vmul.f32 %v1075, 1.442695
          %v1218 = vpow.pop %v1217
          %v1219 = vmul.f32 %v1076, 1.442695
          %v1220 = vpow.pop %v1219
          %v1221 = vmul.f32 %v1077, 1.442695
          %v1222 = vpow.pop %v1221
          %v1223 = vmul.f32 %v1078, 1.442695
          %v1224 = vpow.pop %v1223
          %v1225 = vmul.f32 %v1079, 1.442695
          %v1226 = vpow.pop %v1225
          %v1227 = vmul.f32 %v1080, 1.442695
          %v1228 = vpow.pop %v1227
          %v1229 = vmul.f32 %v1081, 1.442695
          %v1230 = vpow.pop %v1229
          %v1231 = vmul.f32 %v1082, 1.442695
          %v1232 = vpow.pop %v1231
          %v1233 = vmul.f32 %v1083, 1.442695
          %v1234 = vpow.pop %v1233
          %v1235 = vmul.f32 %v1084, 1.442695
          %v1236 = vpow.pop %v1235
          %v1237 = vmul.f32 %v1085, 1.442695
          %v1238 = vpow.pop %v1237
          %v1239 = vmul.f32 %v1086, 1.442695
          %v1240 = vpow.pop %v1239
          %v1241 = vmul.f32 %v1087, 1.442695
          %v1242 = vpow.pop %v1241
          %v1243 = vmul.f32 %v1088, 1.442695
          %v1244 = vpow.pop %v1243
          %v1245 = vlaneseq
          %v1246 = vand.u32 %v1245, 127
          %v1247 = vadd.s32 %v1246, 128
          %v1248 = vadd.s32 %v1246, 256
          %v1249 = vadd.s32 %v1246, 384
          %v1250 = vadd.s32 %v1246, 512
          %v1251 = vadd.s32 %v1246, 640
          %vm1252 = vcmp.lt.s32.totalorder %v1246, 700
          %vm1253 = vcmp.lt.s32.totalorder %v1247, 700
          %vm1254 = vcmp.lt.s32.totalorder %v1248, 700
          %vm1255 = vcmp.lt.s32.totalorder %v1249, 700
          %vm1256 = vcmp.lt.s32.totalorder %v1250, 700
          %vm1257 = vcmp.lt.s32.totalorder %v1251, 700
          %v1258 = vsel %vm1252, 1, 0
          %v1259 = vsel %vm1253, 1, 0
          %v1260 = vsel %vm1254, 1, 0
          %v1261 = vsel %vm1255, 1, 0
          %v1262 = vsel %vm1256, 1, 0
          %v1263 = vsel %vm1257, 1, 0
          %vm1264 = vcmp.eq.s32.totalorder %v1258, 1
          %vm1265 = vcmp.eq.s32.totalorder %v1259, 1
          %vm1266 = vcmp.eq.s32.totalorder %v1260, 1
          %vm1267 = vcmp.eq.s32.totalorder %v1261, 1
          %vm1268 = vcmp.eq.s32.totalorder %v1262, 1
          %vm1269 = vcmp.eq.s32.totalorder %v1263, 1
          %v1270 = vsel %vm1264, %v1090, 0.0
          %v1271 = vsel %vm1265, %v1092, 0.0
          %v1272 = vsel %vm1266, %v1094, 0.0
          %v1273 = vsel %vm1267, %v1096, 0.0
          %v1274 = vsel %vm1268, %v1098, 0.0
          %v1275 = vsel %vm1269, %v1100, 0.0
          %v1276 = vsel %vm1264, %v1102, 0.0
          %v1277 = vsel %vm1265, %v1104, 0.0
          %v1278 = vsel %vm1266, %v1106, 0.0
          %v1279 = vsel %vm1267, %v1108, 0.0
          %v1280 = vsel %vm1268, %v1110, 0.0
          %v1281 = vsel %vm1269, %v1112, 0.0
          %v1282 = vsel %vm1264, %v1114, 0.0
          %v1283 = vsel %vm1265, %v1116, 0.0
          %v1284 = vsel %vm1266, %v1118, 0.0
          %v1285 = vsel %vm1267, %v1120, 0.0
          %v1286 = vsel %vm1268, %v1122, 0.0
          %v1287 = vsel %vm1269, %v1124, 0.0
          %v1288 = vsel %vm1264, %v1126, 0.0
          %v1289 = vsel %vm1265, %v1128, 0.0
          %v1290 = vsel %vm1266, %v1130, 0.0
          %v1291 = vsel %vm1267, %v1132, 0.0
          %v1292 = vsel %vm1268, %v1134, 0.0
          %v1293 = vsel %vm1269, %v1136, 0.0
          %v1294 = vsel %vm1264, %v1138, 0.0
          %v1295 = vsel %vm1265, %v1140, 0.0
          %v1296 = vsel %vm1266, %v1142, 0.0
          %v1297 = vsel %vm1267, %v1144, 0.0
          %v1298 = vsel %vm1268, %v1146, 0.0
          %v1299 = vsel %vm1269, %v1148, 0.0
          %v1300 = vsel %vm1264, %v1150, 0.0
          %v1301 = vsel %vm1265, %v1152, 0.0
          %v1302 = vsel %vm1266, %v1154, 0.0
          %v1303 = vsel %vm1267, %v1156, 0.0
          %v1304 = vsel %vm1268, %v1158, 0.0
          %v1305 = vsel %vm1269, %v1160, 0.0
          %v1306 = vsel %vm1264, %v1162, 0.0
          %v1307 = vsel %vm1265, %v1164, 0.0
          %v1308 = vsel %vm1266, %v1166, 0.0
          %v1309 = vsel %vm1267, %v1168, 0.0
          %v1310 = vsel %vm1268, %v1170, 0.0
          %v1311 = vsel %vm1269, %v1172, 0.0
          %v1312 = vsel %vm1264, %v1174, 0.0
          %v1313 = vsel %vm1265, %v1176, 0.0
          %v1314 = vsel %vm1266, %v1178, 0.0
          %v1315 = vsel %vm1267, %v1180, 0.0
          %v1316 = vsel %vm1268, %v1182, 0.0
          %v1317 = vsel %vm1269, %v1184, 0.0
          %v1318 = vsel %vm1264, %v1186, 0.0
          %v1319 = vsel %vm1265, %v1188, 0.0
          %v1320 = vsel %vm1266, %v1190, 0.0
          %v1321 = vsel %vm1267, %v1192, 0.0
          %v1322 = vsel %vm1268, %v1194, 0.0
          %v1323 = vsel %vm1269, %v1196, 0.0
          %v1324 = vsel %vm1264, %v1198, 0.0
          %v1325 = vsel %vm1265, %v1200, 0.0
          %v1326 = vsel %vm1266, %v1202, 0.0
          %v1327 = vsel %vm1267, %v1204, 0.0
          %v1328 = vsel %vm1268, %v1206, 0.0
          %v1329 = vsel %vm1269, %v1208, 0.0
          %v1330 = vsel %vm1264, %v1210, 0.0
          %v1331 = vsel %vm1265, %v1212, 0.0
          %v1332 = vsel %vm1266, %v1214, 0.0
          %v1333 = vsel %vm1267, %v1216, 0.0
          %v1334 = vsel %vm1268, %v1218, 0.0
          %v1335 = vsel %vm1269, %v1220, 0.0
          %v1336 = vsel %vm1264, %v1222, 0.0
          %v1337 = vsel %vm1265, %v1224, 0.0
          %v1338 = vsel %vm1266, %v1226, 0.0
          %v1339 = vsel %vm1267, %v1228, 0.0
          %v1340 = vsel %vm1268, %v1230, 0.0
          %v1341 = vsel %vm1269, %v1232, 0.0
          %v1342 = vsel %vm1264, %v1234, 0.0
          %v1343 = vsel %vm1265, %v1236, 0.0
          %v1344 = vsel %vm1266, %v1238, 0.0
          %v1345 = vsel %vm1267, %v1240, 0.0
          %v1346 = vsel %vm1268, %v1242, 0.0
          %v1347 = vsel %vm1269, %v1244, 0.0
          %v1348 = vadd.f32 %v1270, %v1271
          %v1349 = vadd.f32 %v1348, %v1272
          %v1350 = vadd.f32 %v1349, %v1273
          %v1351 = vadd.f32 %v1350, %v1274
          %v1352 = vadd.f32 %v1351, %v1275
          %1353 = vadd.xlane.f32.xlu0 %v1352
          %v1354 = vpop.xlane.xlu0 %1353
          %v1355 = vadd.f32 %v1276, %v1277
          %v1356 = vadd.f32 %v1355, %v1278
          %v1357 = vadd.f32 %v1356, %v1279
          %v1358 = vadd.f32 %v1357, %v1280
          %v1359 = vadd.f32 %v1358, %v1281
          %1360 = vadd.xlane.f32.xlu0 %v1359
          %v1361 = vpop.xlane.xlu0 %1360
          %v1362 = vadd.f32 %v1282, %v1283
          %v1363 = vadd.f32 %v1362, %v1284
          %v1364 = vadd.f32 %v1363, %v1285
          %v1365 = vadd.f32 %v1364, %v1286
          %v1366 = vadd.f32 %v1365, %v1287
          %1367 = vadd.xlane.f32.xlu0 %v1366
          %v1368 = vpop.xlane.xlu0 %1367
          %v1369 = vadd.f32 %v1288, %v1289
          %v1370 = vadd.f32 %v1369, %v1290
          %v1371 = vadd.f32 %v1370, %v1291
          %v1372 = vadd.f32 %v1371, %v1292
          %v1373 = vadd.f32 %v1372, %v1293
          %1374 = vadd.xlane.f32.xlu0 %v1373
          %v1375 = vpop.xlane.xlu0 %1374
          %v1376 = vadd.f32 %v1294, %v1295
          %v1377 = vadd.f32 %v1376, %v1296
          %v1378 = vadd.f32 %v1377, %v1297
          %v1379 = vadd.f32 %v1378, %v1298
          %v1380 = vadd.f32 %v1379, %v1299
          %1381 = vadd.xlane.f32.xlu0 %v1380
          %v1382 = vpop.xlane.xlu0 %1381
          %v1383 = vadd.f32 %v1300, %v1301
          %v1384 = vadd.f32 %v1383, %v1302
          %v1385 = vadd.f32 %v1384, %v1303
          %v1386 = vadd.f32 %v1385, %v1304
          %v1387 = vadd.f32 %v1386, %v1305
          %1388 = vadd.xlane.f32.xlu0 %v1387
          %v1389 = vpop.xlane.xlu0 %1388
          %v1390 = vadd.f32 %v1306, %v1307
          %v1391 = vadd.f32 %v1390, %v1308
          %v1392 = vadd.f32 %v1391, %v1309
          %v1393 = vadd.f32 %v1392, %v1310
          %v1394 = vadd.f32 %v1393, %v1311
          %1395 = vadd.xlane.f32.xlu0 %v1394
          %v1396 = vpop.xlane.xlu0 %1395
          %v1397 = vadd.f32 %v1312, %v1313
          %v1398 = vadd.f32 %v1397, %v1314
          %v1399 = vadd.f32 %v1398, %v1315
          %v1400 = vadd.f32 %v1399, %v1316
          %v1401 = vadd.f32 %v1400, %v1317
          %1402 = vadd.xlane.f32.xlu0 %v1401
          %v1403 = vpop.xlane.xlu0 %1402
          %v1404 = vadd.f32 %v1318, %v1319
          %v1405 = vadd.f32 %v1404, %v1320
          %v1406 = vadd.f32 %v1405, %v1321
          %v1407 = vadd.f32 %v1406, %v1322
          %v1408 = vadd.f32 %v1407, %v1323
          %1409 = vadd.xlane.f32.xlu0 %v1408
          %v1410 = vpop.xlane.xlu0 %1409
          %v1411 = vadd.f32 %v1324, %v1325
          %v1412 = vadd.f32 %v1411, %v1326
          %v1413 = vadd.f32 %v1412, %v1327
          %v1414 = vadd.f32 %v1413, %v1328
          %v1415 = vadd.f32 %v1414, %v1329
          %1416 = vadd.xlane.f32.xlu0 %v1415
          %v1417 = vpop.xlane.xlu0 %1416
          %v1418 = vadd.f32 %v1330, %v1331
          %v1419 = vadd.f32 %v1418, %v1332
          %v1420 = vadd.f32 %v1419, %v1333
          %v1421 = vadd.f32 %v1420, %v1334
          %v1422 = vadd.f32 %v1421, %v1335
          %1423 = vadd.xlane.f32.xlu0 %v1422
          %v1424 = vpop.xlane.xlu0 %1423
          %v1425 = vadd.f32 %v1336, %v1337
          %v1426 = vadd.f32 %v1425, %v1338
          %v1427 = vadd.f32 %v1426, %v1339
          %v1428 = vadd.f32 %v1427, %v1340
          %v1429 = vadd.f32 %v1428, %v1341
          %1430 = vadd.xlane.f32.xlu0 %v1429
          %v1431 = vpop.xlane.xlu0 %1430
          %v1432 = vadd.f32 %v1342, %v1343
          %v1433 = vadd.f32 %v1432, %v1344
          %v1434 = vadd.f32 %v1433, %v1345
          %v1435 = vadd.f32 %v1434, %v1346
          %v1436 = vadd.f32 %v1435, %v1347
          %1437 = vadd.xlane.f32.xlu0 %v1436
          %v1438 = vpop.xlane.xlu0 %1437
          %v1439 = vrcp.pop %v1354
          %v1440 = vrcp.pop %v1361
          %v1441 = vrcp.pop %v1368
          %v1442 = vrcp.pop %v1375
          %v1443 = vrcp.pop %v1382
          %v1444 = vrcp.pop %v1389
          %v1445 = vrcp.pop %v1396
          %v1446 = vrcp.pop %v1403
          %v1447 = vrcp.pop %v1410
          %v1448 = vrcp.pop %v1417
          %v1449 = vrcp.pop %v1424
          %v1450 = vrcp.pop %v1431
          %v1451 = vrcp.pop %v1438
          %v1452 = vmul.f32 %v1270, %v1439
          %v1453 = vmul.f32 %v1271, %v1439
          %v1454 = vmul.f32 %v1272, %v1439
          %v1455 = vmul.f32 %v1273, %v1439
          %v1456 = vmul.f32 %v1274, %v1439
          %v1457 = vmul.f32 %v1275, %v1439
          %v1458 = vmul.f32 %v1276, %v1440
          %v1459 = vmul.f32 %v1277, %v1440
          %v1460 = vmul.f32 %v1278, %v1440
          %v1461 = vmul.f32 %v1279, %v1440
          %v1462 = vmul.f32 %v1280, %v1440
          %v1463 = vmul.f32 %v1281, %v1440
          %v1464 = vmul.f32 %v1282, %v1441
          %v1465 = vmul.f32 %v1283, %v1441
          %v1466 = vmul.f32 %v1284, %v1441
          %v1467 = vmul.f32 %v1285, %v1441
          %v1468 = vmul.f32 %v1286, %v1441
          %v1469 = vmul.f32 %v1287, %v1441
          %v1470 = vmul.f32 %v1288, %v1442
          %v1471 = vmul.f32 %v1289, %v1442
          %v1472 = vmul.f32 %v1290, %v1442
          %v1473 = vmul.f32 %v1291, %v1442
          %v1474 = vmul.f32 %v1292, %v1442
          %v1475 = vmul.f32 %v1293, %v1442
          %v1476 = vmul.f32 %v1294, %v1443
          %v1477 = vmul.f32 %v1295, %v1443
          %v1478 = vmul.f32 %v1296, %v1443
          %v1479 = vmul.f32 %v1297, %v1443
          %v1480 = vmul.f32 %v1298, %v1443
          %v1481 = vmul.f32 %v1299, %v1443
          %v1482 = vmul.f32 %v1300, %v1444
          %v1483 = vmul.f32 %v1301, %v1444
          %v1484 = vmul.f32 %v1302, %v1444
          %v1485 = vmul.f32 %v1303, %v1444
          %v1486 = vmul.f32 %v1304, %v1444
          %v1487 = vmul.f32 %v1305, %v1444
          %v1488 = vmul.f32 %v1306, %v1445
          %v1489 = vmul.f32 %v1307, %v1445
          %v1490 = vmul.f32 %v1308, %v1445
          %v1491 = vmul.f32 %v1309, %v1445
          %v1492 = vmul.f32 %v1310, %v1445
          %v1493 = vmul.f32 %v1311, %v1445
          %v1494 = vmul.f32 %v1312, %v1446
          %v1495 = vmul.f32 %v1313, %v1446
          %v1496 = vmul.f32 %v1314, %v1446
          %v1497 = vmul.f32 %v1315, %v1446
          %v1498 = vmul.f32 %v1316, %v1446
          %v1499 = vmul.f32 %v1317, %v1446
          %v1500 = vmul.f32 %v1318, %v1447
          %v1501 = vmul.f32 %v1319, %v1447
          %v1502 = vmul.f32 %v1320, %v1447
          %v1503 = vmul.f32 %v1321, %v1447
          %v1504 = vmul.f32 %v1322, %v1447
          %v1505 = vmul.f32 %v1323, %v1447
          %v1506 = vmul.f32 %v1324, %v1448
          %v1507 = vmul.f32 %v1325, %v1448
          %v1508 = vmul.f32 %v1326, %v1448
          %v1509 = vmul.f32 %v1327, %v1448
          %v1510 = vmul.f32 %v1328, %v1448
          %v1511 = vmul.f32 %v1329, %v1448
          %v1512 = vmul.f32 %v1330, %v1449
          %v1513 = vmul.f32 %v1331, %v1449
          %v1514 = vmul.f32 %v1332, %v1449
          %v1515 = vmul.f32 %v1333, %v1449
          %v1516 = vmul.f32 %v1334, %v1449
          %v1517 = vmul.f32 %v1335, %v1449
          %v1518 = vmul.f32 %v1336, %v1450
          %v1519 = vmul.f32 %v1337, %v1450
          %v1520 = vmul.f32 %v1338, %v1450
          %v1521 = vmul.f32 %v1339, %v1450
          %v1522 = vmul.f32 %v1340, %v1450
          %v1523 = vmul.f32 %v1341, %v1450
          %v1524 = vmul.f32 %v1342, %v1451
          %v1525 = vmul.f32 %v1343, %v1451
          %v1526 = vmul.f32 %v1344, %v1451
          %v1527 = vmul.f32 %v1345, %v1451
          %v1528 = vmul.f32 %v1346, %v1451
          %v1529 = vmul.f32 %v1347, %v1451
          %1530 = vst [vmem:[%s340] sm:$0xff] %v1452
          %1531 = vst [vmem:[%s340 + $0x8] sm:$0xff] %v1453
          %1532 = vst [vmem:[%s340 + $0x10] sm:$0xff] %v1454
          %1533 = vst [vmem:[%s340 + $0x18] sm:$0xff] %v1455
          %1534 = vst [vmem:[%s340 + $0x20] sm:$0xff] %v1456
          %1535 = vst [vmem:[%s340 + $0x28] sm:$0xff] %v1457
          %1536 = vst [vmem:[%s340 + $0x30] sm:$0xff] %v1458
          %1537 = vst [vmem:[%s340 + $0x38] sm:$0xff] %v1459
          %1538 = vst [vmem:[%s340 + $0x40] sm:$0xff] %v1460
          %1539 = vst [vmem:[%s340 + $0x48] sm:$0xff] %v1461
          %1540 = vst [vmem:[%s340 + $0x50] sm:$0xff] %v1462
          %1541 = vst [vmem:[%s340 + $0x58] sm:$0xff] %v1463
          %1542 = vst [vmem:[%s340 + $0x60] sm:$0xff] %v1464
          %1543 = vst [vmem:[%s340 + $0x68] sm:$0xff] %v1465
          %1544 = vst [vmem:[%s340 + $0x70] sm:$0xff] %v1466
          %1545 = vst [vmem:[%s340 + $0x78] sm:$0xff] %v1467
          %1546 = vst [vmem:[%s340 + $0x80] sm:$0xff] %v1468
          %1547 = vst [vmem:[%s340 + $0x88] sm:$0xff] %v1469
          %1548 = vst [vmem:[%s340 + $0x90] sm:$0xff] %v1470
          %1549 = vst [vmem:[%s340 + $0x98] sm:$0xff] %v1471
          %1550 = vst [vmem:[%s340 + $0xa0] sm:$0xff] %v1472
          %1551 = vst [vmem:[%s340 + $0xa8] sm:$0xff] %v1473
          %1552 = vst [vmem:[%s340 + $0xb0] sm:$0xff] %v1474
          %1553 = vst [vmem:[%s340 + $0xb8] sm:$0xff] %v1475
          %1554 = vst [vmem:[%s340 + $0xc0] sm:$0xff] %v1476
          %1555 = vst [vmem:[%s340 + $0xc8] sm:$0xff] %v1477
          %1556 = vst [vmem:[%s340 + $0xd0] sm:$0xff] %v1478
          %1557 = vst [vmem:[%s340 + $0xd8] sm:$0xff] %v1479
          %1558 = vst [vmem:[%s340 + $0xe0] sm:$0xff] %v1480
          %1559 = vst [vmem:[%s340 + $0xe8] sm:$0xff] %v1481
          %1560 = vst [vmem:[%s340 + $0xf0] sm:$0xff] %v1482
          %1561 = vst [vmem:[%s340 + $0xf8] sm:$0xff] %v1483
          %1562 = vst [vmem:[%s340 + $0x100] sm:$0xff] %v1484
          %1563 = vst [vmem:[%s340 + $0x108] sm:$0xff] %v1485
          %1564 = vst [vmem:[%s340 + $0x110] sm:$0xff] %v1486
          %1565 = vst [vmem:[%s340 + $0x118] sm:$0xff] %v1487
          %1566 = vst [vmem:[%s340 + $0x120] sm:$0xff] %v1488
          %1567 = vst [vmem:[%s340 + $0x128] sm:$0xff] %v1489
          %1568 = vst [vmem:[%s340 + $0x130] sm:$0xff] %v1490
          %1569 = vst [vmem:[%s340 + $0x138] sm:$0xff] %v1491
          %1570 = vst [vmem:[%s340 + $0x140] sm:$0xff] %v1492
          %1571 = vst [vmem:[%s340 + $0x148] sm:$0xff] %v1493
          %1572 = vst [vmem:[%s340 + $0x150] sm:$0xff] %v1494
          %1573 = vst [vmem:[%s340 + $0x158] sm:$0xff] %v1495
          %1574 = vst [vmem:[%s340 + $0x160] sm:$0xff] %v1496
          %1575 = vst [vmem:[%s340 + $0x168] sm:$0xff] %v1497
          %1576 = vst [vmem:[%s340 + $0x170] sm:$0xff] %v1498
          %1577 = vst [vmem:[%s340 + $0x178] sm:$0xff] %v1499
          %1578 = vst [vmem:[%s340 + $0x180] sm:$0xff] %v1500
          %1579 = vst [vmem:[%s340 + $0x188] sm:$0xff] %v1501
          %1580 = vst [vmem:[%s340 + $0x190] sm:$0xff] %v1502
          %1581 = vst [vmem:[%s340 + $0x198] sm:$0xff] %v1503
          %1582 = vst [vmem:[%s340 + $0x1a0] sm:$0xff] %v1504
          %1583 = vst [vmem:[%s340 + $0x1a8] sm:$0xff] %v1505
          %1584 = vst [vmem:[%s340 + $0x1b0] sm:$0xff] %v1506
          %1585 = vst [vmem:[%s340 + $0x1b8] sm:$0xff] %v1507
          %1586 = vst [vmem:[%s340 + $0x1c0] sm:$0xff] %v1508
          %1587 = vst [vmem:[%s340 + $0x1c8] sm:$0xff] %v1509
          %1588 = vst [vmem:[%s340 + $0x1d0] sm:$0xff] %v1510
          %1589 = vst [vmem:[%s340 + $0x1d8] sm:$0xff] %v1511
          %1590 = vst [vmem:[%s340 + $0x1e0] sm:$0xff] %v1512
          %1591 = vst [vmem:[%s340 + $0x1e8] sm:$0xff] %v1513
          %1592 = vst [vmem:[%s340 + $0x1f0] sm:$0xff] %v1514
          %1593 = vst [vmem:[%s340 + $0x1f8] sm:$0xff] %v1515
          %1594 = vst [vmem:[%s340 + $0x200] sm:$0xff] %v1516
          %1595 = vst [vmem:[%s340 + $0x208] sm:$0xff] %v1517
          %1596 = vst [vmem:[%s340 + $0x210] sm:$0xff] %v1518
          %1597 = vst [vmem:[%s340 + $0x218] sm:$0xff] %v1519
          %1598 = vst [vmem:[%s340 + $0x220] sm:$0xff] %v1520
          %1599 = vst [vmem:[%s340 + $0x228] sm:$0xff] %v1521
          %1600 = vst [vmem:[%s340 + $0x230] sm:$0xff] %v1522
          %1601 = vst [vmem:[%s340 + $0x238] sm:$0xff] %v1523
          %1602 = vst [vmem:[%s340 + $0x240] sm:$0xff] %v1524
          %1603 = vst [vmem:[%s340 + $0x248] sm:$0xff] %v1525
          %1604 = vst [vmem:[%s340 + $0x250] sm:$0xff] %v1526
          %1605 = vst [vmem:[%s340 + $0x258] sm:$0xff] %v1527
          %1606 = vst [vmem:[%s340 + $0x260] sm:$0xff] %v1528
          %1607 = vst [vmem:[%s340 + $0x268] sm:$0xff] %v1529
        $region67: #{generate_mode_forward.1} parent=50 // pred_fallthru
          _
        %s1608 = smul.u32 13, %s18
        %p1609 = scmp.lt.s32.totalorder %s1608, 25
        %s1610 = scalar_select %p1609, %s1608, 25
        %s1611 = smul.addr %s1610, 6
        %s1612 = smul.addr %s1611, 8
        %s1613 = scalar_lea.vmem %s3, %s1612
        // Predicated region
        $region68: #{generate_mode_forward.1} parent=50 // pred_check
          %p1614 = pneg %p122
        $region69: #{generate_mode_forward.1} parent=50 // pred_check_branch
          %1616 = sbr.rel (%p1614) target = $region71
        $region70: #{generate_mode_forward.1} parent=50 // pred_region
          %s1617 = smul.u32 13, %s18
        $region71: #{generate_mode_forward.1} parent=50 // pred_fallthru
          _
      $region51: #{generate_mode_forward.1} parent=5 // pred_fallthru
        _
      %p1618 = scmp.le.s32.totalorder 2, %s9
      // Predicated region
      $region72: #{generate_mode_forward.1} parent=5 // pred_check
        %p1619 = pneg %p1618
      $region73: #{generate_mode_forward.1} parent=5 // pred_check_branch
        %1621 = sbr.rel (%p1619) target = $region75
      $region74: #{generate_mode_forward.1} parent=5 // pred_region
        %s1622 = ssub.s32 %s9, 2
        // Predicated region
        $region76: #{generate_mode_forward.1} parent=74 // pred_check
          %p1623 = pneg %p128
        $region77: #{generate_mode_forward.1} parent=74 // pred_check_branch
          %1625 = sbr.rel (%p1623) target = $region79
        $region78: #{generate_mode_forward.1} parent=74 // pred_region
          %s1626 = smul.u32 13, %s20
          %p1627 = scmp.lt.s32.totalorder %s1626, 25
          %s1628 = scalar_select %p1627, %s1626, 25
          %s1629 = smul.addr %s1628, 6
          %s1630 = smul.addr %s1629, 8
          %s1631 = scalar_lea.vmem %s3, %s1630
        $region79: #{generate_mode_forward.1} parent=74 // pred_fallthru
          _
      $region75: #{generate_mode_forward.1} parent=5 // pred_fallthru
        _
    $region6: #{generate_mode_forward.1} parent=1 // loop_footer
      %s13 = sadd.s32 1, %s9
    $region7: #{generate_mode_forward.1} parent=1 // loop_footer_branch
      %8 = sbr.rel target = $region3
    $region8: #{generate_mode_forward.1} parent=1 // loop_exit
      _

</llo_original>
